<compile_context>
chip_gen: v7x
topology: tpu7x:2x2x1
jax: 0.10.0
libtpu: 0.0.40
codegen_flags: <defaults>
</compile_context>

<pallas_src>
import numpy as np
import jax
import jax.numpy as jnp
from jax import lax
from jax.experimental import pallas as pl
from jax.experimental.pallas import tpu as pltpu

# ----------------------------- model hyper-params ---------------------------
NUM_NODES = 32          # num_nodes
NFEAT = 32              # entity_in_dim
NHID = 16               # entity_out_dim[0]
NHEADS = 2              # nheads_GAT[0]   (nfeat == nhid * nheads, as in KBGAT)
NUM_REL = 8             # number of relations
RELATION_DIM = 16       # relation embedding dim
LAYER_NUM = 2           # must be >= 2 (matches reference default)
ALPHA = 0.2             # LeakyReLU negative slope
NUM_EDGES = 8           # batch size (number of triples)
HID_CAT = NHID * NHEADS


def _pad8(n):
    return ((int(n) + 7) // 8) * 8


# ---------------------------- static weight layouts --------------------------
def _att_layer_dims(l, layer_num):
    # (node-feature dim, edge-feature dim, output dim) of layer l's stand-in.
    if l == 0:
        return NFEAT, RELATION_DIM, HID_CAT
    if l == layer_num - 1:
        return HID_CAT, NHID, NFEAT
    return HID_CAT, NHID, HID_CAT


def _att_layout(layer_num):
    offs, rows, width = [], 0, 0
    for l in range(layer_num):
        d_node, d_edge, d_out = _att_layer_dims(l, layer_num)
        offs.append(rows)
        rows += _pad8(2 * d_node + d_edge)
        width = max(width, d_out)
    return tuple(offs), rows, width


def _wmisc_layout(layer_num):
    width = max(NHID, NFEAT, HID_CAT)
    off, rows = {}, 0
    off["W1"] = rows; rows += _pad8(RELATION_DIM)
    if layer_num > 2:
        off["W2"] = rows; rows += _pad8(NHID)
    off["W3"] = rows; rows += _pad8(NHID)
    off["W_source"] = rows; rows += _pad8(NFEAT)
    off["W_target"] = rows; rows += _pad8(NFEAT)
    return off, rows, width


# ------------------------------ in-kernel helpers ----------------------------
def _leaky_relu(x):
    return jnp.maximum(x, ALPHA * x)


def _elu(x):
    # clamped "exp(min(x,0)) - 1": no exp of large positives, no inf.
    return jnp.where(x > 0, x, jnp.exp(jnp.minimum(x, 0.0)) - 1.0)


def _row_l2_normalize(x):
    # == F.normalize(p=2, dim=1), via EUP rsqrt.
    ss = jnp.sum(x * x, axis=-1, keepdims=True)
    return x * lax.rsqrt(jnp.maximum(ss, 1e-24))


def _one_hot_rows(idx_col, n):
    # idx_col: (K, 1) int32 (-1 padded) -> (K, n) f32; row k one-hot at idx[k].
    k = idx_col.shape[0]
    cols = lax.broadcasted_iota(jnp.int32, (k, n), 1)
    return (cols == idx_col).astype(jnp.float32)


def _one_hot_cols(idx_row, n):
    # idx_row: (1, K) int32 (-1 padded) -> (n, K) f32; col k one-hot at idx[k].
    k = idx_row.shape[1]
    rows = lax.broadcasted_iota(jnp.int32, (n, k), 0)
    return (rows == idx_row).astype(jnp.float32)


# ------------------------------- fused kernel --------------------------------
def make_fused_kernel(e_pad, t_pad, s_pad, u_pad, has_source, layer_num):
    wmisc_off, _, _ = _wmisc_layout(layer_num)
    att_off, _, _ = _att_layout(layer_num)

    def kernel(ent_ref, rel_ref, wmisc_ref, att_ref, col_ref, row_ref,
               ent_out_ref, rel_out_ref):
        dot = lambda a, b: jnp.dot(a, b, preferred_element_type=jnp.float32)
        # TODO(synk): cast matmul operands to bf16 for v6e/v7x once shapes grow
        # (one-hots are exact in bf16); kept f32 here for exactness at toy size.

        # 1. entity_embeddings.data = F.normalize(entity_embeddings, p=2, dim=1)
        ent = _row_l2_normalize(ent_ref[...])            # (N, F)
        rel = rel_ref[...]                               # (R, RD)

        # static, 8-aligned slices of the packed weight slabs (value views)
        wmisc = wmisc_ref[...]
        w1 = wmisc[wmisc_off["W1"]:wmisc_off["W1"] + RELATION_DIM, :NHID]
        w2 = (wmisc[wmisc_off["W2"]:wmisc_off["W2"] + NHID, :NHID]
              if layer_num > 2 else None)
        w3 = wmisc[wmisc_off["W3"]:wmisc_off["W3"] + NHID, :NFEAT]
        w_src = wmisc[wmisc_off["W_source"]:wmisc_off["W_source"] + NFEAT, :HID_CAT]
        w_tgt = wmisc[wmisc_off["W_target"]:wmisc_off["W_target"] + NFEAT, :NFEAT]
        att_w = att_ref[...]

        cols = col_ref[...]                              # (Lcol, 4) int32
        rows = row_ref[...]                              # (2|3, Lrow) int32

        # 2. batched one-hot gather against the normalized embeddings
        #    (rows = [edge_tail | edge_head | scatter_target | scatter_source])
        big_g = _one_hot_rows(cols[:, 0:1], NUM_NODES)   # (Lg, N)
        big_x = dot(big_g, ent)                          # ONE MXU push for all gathers
        x_tail = big_x[0:e_pad]                          # (E, F)
        x_head = big_x[e_pad:2 * e_pad]                  # (E, F)
        ent_target_embed = dot(big_x[2 * e_pad:2 * e_pad + t_pad], w_tgt)   # (Tp, F)
        if has_source:
            src_rows = big_x[2 * e_pad + t_pad:2 * e_pad + t_pad + s_pad]
            ent_source_embed = dot(src_rows, w_src)      # (Sp, HID_CAT)

        # 3. reusable one-hots (built once, in VMEM, used every layer)
        etype_g = _one_hot_rows(cols[:e_pad, 1:2], NUM_REL)        # (E, R)
        edge_embed = dot(etype_g, rel)                             # (E, RD)
        th_g = _one_hot_rows(cols[:2 * e_pad, 2:3], u_pad)         # (2E, U)
        tgtc_g = _one_hot_rows(cols[:t_pad, 3:4], u_pad)           # (Tp, U)

        agg_scatter = _one_hot_cols(rows[0:1, :e_pad], u_pad)      # (U, E)
        tgt_node_scatter = _one_hot_cols(rows[1:2, :t_pad], NUM_NODES)   # (N, Tp)
        node_mask = jnp.sum(tgt_node_scatter, axis=1, keepdims=True)     # (N, 1)
        if has_source:
            src_scatter = _one_hot_cols(rows[2:3, :s_pad], u_pad)        # (U, Sp)
            src_row_mask = jnp.sum(src_scatter, axis=1, keepdims=True)   # (U, 1)

        # 4. layer loop (trace-time unrolled)
        out_rel = None
        x = None
        for l in range(layer_num):
            d_node, d_edge, d_out = _att_layer_dims(l, layer_num)
            r0 = att_off[l]
            w_t = att_w[r0:r0 + d_node, :d_out]
            w_h = att_w[r0 + d_node:r0 + 2 * d_node, :d_out]
            w_r = att_w[r0 + 2 * d_node:r0 + 2 * d_node + d_edge, :d_out]
            # TODO(synk): SpGraphAttentionLayer_modified is undefined in the
            # reference source; deterministic stand-in with identical I/O:
            # edge projection -> LeakyReLU -> scatter-sum onto tail nodes.
            msgs = _leaky_relu(dot(x_tail, w_t) + dot(x_head, w_h)
                               + dot(edge_embed, w_r))             # (E, d_out)
            x = _elu(dot(agg_scatter, msgs))                       # (U, d_out)
            if l == layer_num - 1:
                out_rel = dot(out_rel, w3)                         # (R, F)
            else:
                # dropout_layer -> identity (inference)
                if has_source:
                    x = x * (1.0 - src_row_mask) + dot(src_scatter, ent_source_embed)
                out_rel = dot(rel, w1) if l == 0 else dot(out_rel, w2)
                edge_embed = dot(etype_g, out_rel)                 # (E, NHID)
                xth = dot(th_g, x)                                 # one MXU push for tail+head
                x_tail = xth[0:e_pad]
                x_head = xth[e_pad:2 * e_pad]

        # 5. target-entity writeback:
        #    entity_embeddings[t] = normalize(x[cont[t]] + entity_target_embed[t])
        target_new = _row_l2_normalize(dot(tgtc_g, x) + ent_target_embed)  # (Tp, F)
        ent_out_ref[...] = ent * (1.0 - node_mask) + dot(tgt_node_scatter, target_new)
        rel_out_ref[...] = out_rel

    return kernel


# ----------------------- cached pallas_call construction ---------------------
_FUSED_CACHE = {}


def _get_fused(e_pad, t_pad, s_pad, u_pad, has_source, layer_num, in_shapes):
    key = (e_pad, t_pad, s_pad, u_pad, has_source, layer_num)
    fn = _FUSED_CACHE.get(key)
    if fn is None:
        kernel = make_fused_kernel(e_pad, t_pad, s_pad, u_pad, has_source, layer_num)
        fused = pl.pallas_call(
            kernel,
            out_shape=(jax.ShapeDtypeStruct((NUM_NODES, NFEAT), jnp.float32),
                       jax.ShapeDtypeStruct((NUM_REL, NFEAT), jnp.float32)),
            grid=(1,),
            in_specs=[pl.BlockSpec(s, lambda i: (0, 0)) for s in in_shapes],
            out_specs=(pl.BlockSpec((NUM_NODES, NFEAT), lambda i: (0, 0)),
                       pl.BlockSpec((NUM_REL, NFEAT), lambda i: (0, 0))),
            compiler_params=pltpu.CompilerParams(
                dimension_semantics=("arbitrary",)),
        )
        fn = jax.jit(fused)
        _FUSED_CACHE[key] = fn
    return fn


# ------------------------------ parameter init -------------------------------
def xavier_uniform(key, shape, gain=1.414):
    fan_in, fan_out = shape
    a = gain * np.sqrt(6.0 / (fan_in + fan_out))
    return jax.random.uniform(key, shape, jnp.float32, -a, a)


def init_params(key):
    ks = jax.random.split(key, 10)
    p = {}
    p["entity_embeddings"] = jax.random.normal(ks[0], (NUM_NODES, NFEAT), jnp.float32)
    p["relation_embeddings"] = jax.random.normal(ks[1], (NUM_REL, RELATION_DIM), jnp.float32)
    p["final_entity_embeddings"] = jax.random.normal(ks[2], (NUM_NODES, HID_CAT), jnp.float32)
    p["final_relation_embeddings"] = jax.random.normal(ks[3], (NUM_REL, HID_CAT), jnp.float32)

    # packed "misc" weight slab: [W1 | (W2) | W3 | W_source | W_target]
    wmisc_off, wmisc_rows, wmisc_width = _wmisc_layout(LAYER_NUM)
    wmisc = np.zeros((wmisc_rows, wmisc_width), np.float32)

    def put(name, w):
        w = np.asarray(w)
        r = wmisc_off[name]
        wmisc[r:r + w.shape[0], :w.shape[1]] = w

    put("W1", xavier_uniform(ks[4], (RELATION_DIM, NHID)))
    if LAYER_NUM > 2:
        put("W2", xavier_uniform(ks[5], (NHID, NHID)))
    put("W3", xavier_uniform(ks[6], (NHID, NFEAT)))
    put("W_source", xavier_uniform(ks[7], (NFEAT, HID_CAT)))
    put("W_target", xavier_uniform(ks[8], (NFEAT, NFEAT)))
    p["wmisc"] = jnp.asarray(wmisc)

    # packed attention-stand-in weight slab (heads batched along the output dim)
    att_off, att_rows, att_width = _att_layout(LAYER_NUM)
    att = np.zeros((att_rows, att_width), np.float32)
    for l in range(LAYER_NUM):
        d_node, d_edge, d_out = _att_layer_dims(l, LAYER_NUM)
        if l == LAYER_NUM - 1:
            w = xavier_uniform(jax.random.fold_in(ks[9], l), (2 * d_node + d_edge, d_out))
        else:
            w = jnp.concatenate(
                [xavier_uniform(jax.random.fold_in(ks[9], l * NHEADS + h + 1000),
                                (2 * d_node + d_edge, NHID)) for h in range(NHEADS)],
                axis=1)
        att[att_off[l]:att_off[l] + w.shape[0], :w.shape[1]] = np.asarray(w)
    p["att_slab"] = jnp.asarray(att)
    return p


# --------------------------------- forward -----------------------------------
def spkbgat_forward(params, batch_inputs_np):
    """batch_inputs_np: (E, 3) int array of (head, relation, tail) triples."""
    assert LAYER_NUM >= 2, "layer_num must be >= 2 (reference default)"

    # edge_list[0] = tails (targets), edge_list[1] = heads (sources)
    edge_tail = np.asarray(batch_inputs_np[:, 2], dtype=np.int64)
    edge_head = np.asarray(batch_inputs_np[:, 0], dtype=np.int64)
    edge_type = np.asarray(batch_inputs_np[:, 1], dtype=np.int64)
    E = int(edge_tail.shape[0])

    # ---- host-side index bookkeeping (unique / continuous maps) -------------
    # TODO(synk): torch.unique / scatter_map_continuous have data-dependent
    # sizes, so this one-time precompute stays host side; device path is a
    # single fused kernel.
    combined = np.concatenate([edge_tail, edge_head])
    scatter_entity = np.unique(combined)
    scatter_target = np.unique(edge_tail)
    src_only = np.array([s for s in edge_head if s not in scatter_target], dtype=np.int64)
    scatter_source = np.unique(src_only) if src_only.size else src_only
    cont = {int(e): i for i, e in enumerate(scatter_entity)}
    cont_tail = np.array([cont[int(e)] for e in edge_tail], dtype=np.int32)
    cont_head = np.array([cont[int(e)] for e in edge_head], dtype=np.int32)

    e_pad = _pad8(E)
    u_pad = _pad8(len(scatter_entity))
    t_len = int(scatter_target.shape[0]); t_pad = _pad8(t_len)
    s_len = int(scatter_source.shape[0]); has_source = s_len > 0
    s_pad = _pad8(s_len) if has_source else 0

    # ---- packed int32 index slabs (-1 sentinel padding, all segments 8-aligned)
    l_col = 2 * e_pad + t_pad + s_pad
    col_slab = np.full((l_col, 4), -1, dtype=np.int32)
    col_slab[0:E, 0] = edge_tail                         # big gather: tails
    col_slab[e_pad:e_pad + E, 0] = edge_head             #             heads
    col_slab[2 * e_pad:2 * e_pad + t_len, 0] = scatter_target
    if has_source:
        col_slab[2 * e_pad + t_pad:2 * e_pad + t_pad + s_len, 0] = scatter_source
    col_slab[0:E, 1] = edge_type                         # relation ids
    col_slab[0:E, 2] = cont_tail                         # cont [tail|head]
    col_slab[e_pad:e_pad + E, 2] = cont_head
    col_slab[0:t_len, 3] = [cont[int(t)] for t in scatter_target]   # cont target

    l_row = max(e_pad, t_pad, s_pad)
    n_row = 3 if has_source else 2
    row_slab = np.full((n_row, l_row), -1, dtype=np.int32)
    row_slab[0, :E] = cont_tail                          # agg scatter key
    row_slab[1, :t_len] = scatter_target                 # writeback scatter key
    if has_source:
        row_slab[2, :s_len] = [cont[int(s)] for s in scatter_source]

    inputs = (params["entity_embeddings"], params["relation_embeddings"],
              params["wmisc"], params["att_slab"],
              jnp.asarray(col_slab), jnp.asarray(row_slab))
    in_shapes = tuple(tuple(x.shape) for x in inputs)

    fn = _get_fused(e_pad, t_pad, s_pad, u_pad, has_source, LAYER_NUM, in_shapes)
    ent_out, rel_out = fn(*inputs)
    return ent_out, rel_out


# ----------------------------------- main ------------------------------------
if __name__ == "__main__":
    key = jax.random.PRNGKey(0)
    pkey, hkey, rkey, tkey = jax.random.split(key, 4)

    params = init_params(pkey)

    heads = np.asarray(jax.random.randint(hkey, (NUM_EDGES,), 0, NUM_NODES))
    rels = np.asarray(jax.random.randint(rkey, (NUM_EDGES,), 0, NUM_REL))
    tails = np.asarray(jax.random.randint(tkey, (NUM_EDGES,), 0, NUM_NODES))
    batch_inputs = np.stack([heads, rels, tails], axis=1).astype(np.int64)  # (E, 3)

    out_entity, out_relation = spkbgat_forward(params, batch_inputs)
    jax.block_until_ready((out_entity, out_relation))

    assert out_entity.shape == (NUM_NODES, NFEAT)
    assert out_relation.shape == (NUM_REL, NFEAT)
    assert bool(jnp.all(jnp.isfinite(out_entity)))
    assert bool(jnp.all(jnp.isfinite(out_relation)))
    print("KERNEL_OK")
</pallas_src>

<mosaic_0001>
module attributes {stable_mosaic.version = 11 : i64} {
  func.func @kernel(%arg0: i32, %arg1: memref<32x32xf32, #tpu.memory_space<vmem>>, %arg2: memref<8x16xf32, #tpu.memory_space<vmem>>, %arg3: memref<96x32xf32, #tpu.memory_space<vmem>>, %arg4: memref<160x32xf32, #tpu.memory_space<vmem>>, %arg5: memref<32x4xi32, #tpu.memory_space<vmem>>, %arg6: memref<3x8xi32, #tpu.memory_space<vmem>>, %arg7: memref<32x32xf32, #tpu.memory_space<vmem>>, %arg8: memref<8x32xf32, #tpu.memory_space<vmem>>) attributes {dimension_semantics = [#tpu.dimension_semantics<arbitrary>], iteration_bounds = array<i64: 1>, scalar_prefetch = 0 : i64, scratch_operands = 0 : i64, tpu.core_type = #tpu.core_type<tc>, window_params = [{pipeline_mode = #tpu.pipeline_mode<synchronous>, transform_indices = @transform_0, window_bounds = array<i64: 32, 32>}, {pipeline_mode = #tpu.pipeline_mode<synchronous>, transform_indices = @transform_1, window_bounds = array<i64: 8, 16>}, {pipeline_mode = #tpu.pipeline_mode<synchronous>, transform_indices = @transform_2, window_bounds = array<i64: 96, 32>}, {pipeline_mode = #tpu.pipeline_mode<synchronous>, transform_indices = @transform_3, window_bounds = array<i64: 160, 32>}, {pipeline_mode = #tpu.pipeline_mode<synchronous>, transform_indices = @transform_4, window_bounds = array<i64: 32, 4>}, {pipeline_mode = #tpu.pipeline_mode<synchronous>, transform_indices = @transform_5, window_bounds = array<i64: 3, 8>}, {pipeline_mode = #tpu.pipeline_mode<synchronous>, transform_indices = @transform_6, window_bounds = array<i64: 32, 32>}, {pipeline_mode = #tpu.pipeline_mode<synchronous>, transform_indices = @transform_7, window_bounds = array<i64: 8, 32>}]} {
    %c0 = arith.constant 0 : index
    %c0_0 = arith.constant 0 : index
    %0 = vector.load %arg1[%c0, %c0_0] : memref<32x32xf32, #tpu.memory_space<vmem>>, vector<32x32xf32>
    %1 = arith.mulf %0, %0 : vector<32x32xf32>
    %cst = arith.constant dense<0.000000e+00> : vector<32xf32>
    %2 = vector.multi_reduction <add>, %1, %cst [1] : vector<32x32xf32> to vector<32xf32>
    %3 = vector.shape_cast %2 : vector<32xf32> to vector<32x1xf32>
    %cst_1 = arith.constant 1.000000e-24 : f32
    %4 = vector.broadcast %cst_1 : f32 to vector<32x1xf32>
    %5 = arith.maximumf %3, %4 : vector<32x1xf32>
    %6 = math.rsqrt %5 : vector<32x1xf32>
    %7 = vector.broadcast %6 : vector<32x1xf32> to vector<32x32xf32>
    %8 = arith.mulf %0, %7 : vector<32x32xf32>
    %c0_2 = arith.constant 0 : index
    %c0_3 = arith.constant 0 : index
    %9 = vector.load %arg2[%c0_2, %c0_3] : memref<8x16xf32, #tpu.memory_space<vmem>>, vector<8x16xf32>
    %c0_4 = arith.constant 0 : index
    %c0_5 = arith.constant 0 : index
    %10 = vector.load %arg3[%c0_4, %c0_5] : memref<96x32xf32, #tpu.memory_space<vmem>>, vector<96x32xf32>
    %11 = vector.extract_strided_slice %10 {offsets = [0, 0], sizes = [16, 16], strides = [1, 1]} : vector<96x32xf32> to vector<16x16xf32>
    %12 = vector.extract_strided_slice %10 {offsets = [16, 0], sizes = [16, 32], strides = [1, 1]} : vector<96x32xf32> to vector<16x32xf32>
    %13 = vector.extract_strided_slice %10 {offsets = [32, 0], sizes = [32, 32], strides = [1, 1]} : vector<96x32xf32> to vector<32x32xf32>
    %14 = vector.extract_strided_slice %10 {offsets = [64, 0], sizes = [32, 32], strides = [1, 1]} : vector<96x32xf32> to vector<32x32xf32>
    %c0_6 = arith.constant 0 : index
    %c0_7 = arith.constant 0 : index
    %15 = vector.load %arg4[%c0_6, %c0_7] : memref<160x32xf32, #tpu.memory_space<vmem>>, vector<160x32xf32>
    %c0_8 = arith.constant 0 : index
    %c0_9 = arith.constant 0 : index
    %16 = vector.load %arg5[%c0_8, %c0_9] : memref<32x4xi32, #tpu.memory_space<vmem>>, vector<32x4xi32>
    %c0_10 = arith.constant 0 : index
    %c0_11 = arith.constant 0 : index
    %17 = vector.load %arg6[%c0_10, %c0_11] : memref<3x8xi32, #tpu.memory_space<vmem>>, vector<3x8xi32>
    %18 = vector.extract_strided_slice %16 {offsets = [0, 0], sizes = [32, 1], strides = [1, 1]} : vector<32x4xi32> to vector<32x1xi32>
    %19 = tpu.iota {dimensions = array<i32: 1>} : vector<32x32xi32>
    %20 = vector.broadcast %18 : vector<32x1xi32> to vector<32x32xi32>
    %21 = arith.cmpi eq, %19, %20 : vector<32x32xi32>
    %22 = arith.extui %21 : vector<32x32xi1> to vector<32x32xi32>
    %23 = arith.sitofp %22 : vector<32x32xi32> to vector<32x32xf32>
    %cst_12 = arith.constant dense<0.000000e+00> : vector<32x32xf32>
    %24 = tpu.matmul %23, %8, %cst_12 {dimension_numbers = #tpu.dot_dimension_numbers<[1], [0], [0], [1], [0, 0, 1, 1], [], []>} : vector<32x32xf32>, vector<32x32xf32>, vector<32x32xf32> -> vector<32x32xf32>
    %25 = vector.extract_strided_slice %24 {offsets = [0, 0], sizes = [8, 32], strides = [1, 1]} : vector<32x32xf32> to vector<8x32xf32>
    %26 = vector.extract_strided_slice %24 {offsets = [8, 0], sizes = [8, 32], strides = [1, 1]} : vector<32x32xf32> to vector<8x32xf32>
    %27 = vector.extract_strided_slice %24 {offsets = [16, 0], sizes = [8, 32], strides = [1, 1]} : vector<32x32xf32> to vector<8x32xf32>
    %cst_13 = arith.constant dense<0.000000e+00> : vector<8x32xf32>
    %28 = tpu.matmul %27, %14, %cst_13 {dimension_numbers = #tpu.dot_dimension_numbers<[1], [0], [0], [1], [0, 0, 1, 1], [], []>} : vector<8x32xf32>, vector<32x32xf32>, vector<8x32xf32> -> vector<8x32xf32>
    %29 = vector.extract_strided_slice %24 {offsets = [24, 0], sizes = [8, 32], strides = [1, 1]} : vector<32x32xf32> to vector<8x32xf32>
    %cst_14 = arith.constant dense<0.000000e+00> : vector<8x32xf32>
    %30 = tpu.matmul %29, %13, %cst_14 {dimension_numbers = #tpu.dot_dimension_numbers<[1], [0], [0], [1], [0, 0, 1, 1], [], []>} : vector<8x32xf32>, vector<32x32xf32>, vector<8x32xf32> -> vector<8x32xf32>
    %31 = vector.extract_strided_slice %16 {offsets = [0, 1], sizes = [8, 1], strides = [1, 1]} : vector<32x4xi32> to vector<8x1xi32>
    %32 = tpu.iota {dimensions = array<i32: 1>} : vector<8x8xi32>
    %33 = vector.broadcast %31 : vector<8x1xi32> to vector<8x8xi32>
    %34 = arith.cmpi eq, %32, %33 : vector<8x8xi32>
    %35 = arith.extui %34 : vector<8x8xi1> to vector<8x8xi32>
    %36 = arith.sitofp %35 : vector<8x8xi32> to vector<8x8xf32>
    %cst_15 = arith.constant dense<0.000000e+00> : vector<8x16xf32>
    %37 = tpu.matmul %36, %9, %cst_15 {dimension_numbers = #tpu.dot_dimension_numbers<[1], [0], [0], [1], [0, 0, 1, 1], [], []>} : vector<8x8xf32>, vector<8x16xf32>, vector<8x16xf32> -> vector<8x16xf32>
    %38 = vector.extract_strided_slice %16 {offsets = [0, 2], sizes = [16, 1], strides = [1, 1]} : vector<32x4xi32> to vector<16x1xi32>
    %39 = tpu.iota {dimensions = array<i32: 1>} : vector<16x16xi32>
    %40 = vector.broadcast %38 : vector<16x1xi32> to vector<16x16xi32>
    %41 = arith.cmpi eq, %39, %40 : vector<16x16xi32>
    %42 = arith.extui %41 : vector<16x16xi1> to vector<16x16xi32>
    %43 = arith.sitofp %42 : vector<16x16xi32> to vector<16x16xf32>
    %44 = vector.extract_strided_slice %16 {offsets = [0, 3], sizes = [8, 1], strides = [1, 1]} : vector<32x4xi32> to vector<8x1xi32>
    %45 = tpu.iota {dimensions = array<i32: 1>} : vector<8x16xi32>
    %46 = vector.broadcast %44 : vector<8x1xi32> to vector<8x16xi32>
    %47 = arith.cmpi eq, %45, %46 : vector<8x16xi32>
    %48 = arith.extui %47 : vector<8x16xi1> to vector<8x16xi32>
    %49 = arith.sitofp %48 : vector<8x16xi32> to vector<8x16xf32>
    %50 = vector.extract_strided_slice %17 {offsets = [0, 0], sizes = [1, 8], strides = [1, 1]} : vector<3x8xi32> to vector<1x8xi32>
    %51 = tpu.iota {dimensions = array<i32: 0>} : vector<16x8xi32>
    %52 = vector.broadcast %50 : vector<1x8xi32> to vector<16x8xi32>
    %53 = arith.cmpi eq, %51, %52 : vector<16x8xi32>
    %54 = arith.extui %53 : vector<16x8xi1> to vector<16x8xi32>
    %55 = arith.sitofp %54 : vector<16x8xi32> to vector<16x8xf32>
    %56 = vector.extract_strided_slice %17 {offsets = [1, 0], sizes = [1, 8], strides = [1, 1]} : vector<3x8xi32> to vector<1x8xi32>
    %57 = tpu.iota {dimensions = array<i32: 0>} : vector<32x8xi32>
    %58 = vector.broadcast %56 : vector<1x8xi32> to vector<32x8xi32>
    %59 = arith.cmpi eq, %57, %58 : vector<32x8xi32>
    %60 = arith.extui %59 : vector<32x8xi1> to vector<32x8xi32>
    %61 = arith.sitofp %60 : vector<32x8xi32> to vector<32x8xf32>
    %cst_16 = arith.constant dense<0.000000e+00> : vector<32xf32>
    %62 = vector.multi_reduction <add>, %61, %cst_16 [1] : vector<32x8xf32> to vector<32xf32>
    %63 = vector.shape_cast %62 : vector<32xf32> to vector<32x1xf32>
    %64 = vector.extract_strided_slice %17 {offsets = [2, 0], sizes = [1, 8], strides = [1, 1]} : vector<3x8xi32> to vector<1x8xi32>
    %65 = tpu.iota {dimensions = array<i32: 0>} : vector<16x8xi32>
    %66 = vector.broadcast %64 : vector<1x8xi32> to vector<16x8xi32>
    %67 = arith.cmpi eq, %65, %66 : vector<16x8xi32>
    %68 = arith.extui %67 : vector<16x8xi1> to vector<16x8xi32>
    %69 = arith.sitofp %68 : vector<16x8xi32> to vector<16x8xf32>
    %cst_17 = arith.constant dense<0.000000e+00> : vector<16xf32>
    %70 = vector.multi_reduction <add>, %69, %cst_17 [1] : vector<16x8xf32> to vector<16xf32>
    %71 = vector.shape_cast %70 : vector<16xf32> to vector<16x1xf32>
    %72 = vector.extract_strided_slice %15 {offsets = [0, 0], sizes = [32, 32], strides = [1, 1]} : vector<160x32xf32> to vector<32x32xf32>
    %73 = vector.extract_strided_slice %15 {offsets = [32, 0], sizes = [32, 32], strides = [1, 1]} : vector<160x32xf32> to vector<32x32xf32>
    %74 = vector.extract_strided_slice %15 {offsets = [64, 0], sizes = [16, 32], strides = [1, 1]} : vector<160x32xf32> to vector<16x32xf32>
    %cst_18 = arith.constant dense<0.000000e+00> : vector<8x32xf32>
    %75 = tpu.matmul %25, %72, %cst_18 {dimension_numbers = #tpu.dot_dimension_numbers<[1], [0], [0], [1], [0, 0, 1, 1], [], []>} : vector<8x32xf32>, vector<32x32xf32>, vector<8x32xf32> -> vector<8x32xf32>
    %cst_19 = arith.constant dense<0.000000e+00> : vector<8x32xf32>
    %76 = tpu.matmul %26, %73, %cst_19 {dimension_numbers = #tpu.dot_dimension_numbers<[1], [0], [0], [1], [0, 0, 1, 1], [], []>} : vector<8x32xf32>, vector<32x32xf32>, vector<8x32xf32> -> vector<8x32xf32>
    %77 = arith.addf %75, %76 : vector<8x32xf32>
    %cst_20 = arith.constant dense<0.000000e+00> : vector<8x32xf32>
    %78 = tpu.matmul %37, %74, %cst_20 {dimension_numbers = #tpu.dot_dimension_numbers<[1], [0], [0], [1], [0, 0, 1, 1], [], []>} : vector<8x16xf32>, vector<16x32xf32>, vector<8x32xf32> -> vector<8x32xf32>
    %79 = arith.addf %77, %78 : vector<8x32xf32>
    %cst_21 = arith.constant 2.000000e-01 : f32
    %80 = vector.broadcast %cst_21 : f32 to vector<8x32xf32>
    %81 = arith.mulf %80, %79 : vector<8x32xf32>
    %82 = arith.maximumf %79, %81 : vector<8x32xf32>
    %cst_22 = arith.constant dense<0.000000e+00> : vector<16x32xf32>
    %83 = tpu.matmul %55, %82, %cst_22 {dimension_numbers = #tpu.dot_dimension_numbers<[1], [0], [0], [1], [0, 0, 1, 1], [], []>} : vector<16x8xf32>, vector<8x32xf32>, vector<16x32xf32> -> vector<16x32xf32>
    %cst_23 = arith.constant 0.000000e+00 : f32
    %84 = vector.broadcast %cst_23 : f32 to vector<16x32xf32>
    %85 = arith.cmpf ogt, %83, %84 : vector<16x32xf32>
    %cst_24 = arith.constant 0.000000e+00 : f32
    %86 = vector.broadcast %cst_24 : f32 to vector<16x32xf32>
    %87 = arith.minimumf %83, %86 : vector<16x32xf32>
    %88 = math.exp %87 : vector<16x32xf32>
    %cst_25 = arith.constant 1.000000e+00 : f32
    %89 = vector.broadcast %cst_25 : f32 to vector<16x32xf32>
    %90 = arith.subf %88, %89 : vector<16x32xf32>
    %91 = arith.select %85, %83, %90 : vector<16x32xi1>, vector<16x32xf32>
    %cst_26 = arith.constant 1.000000e+00 : f32
    %92 = vector.broadcast %cst_26 : f32 to vector<16x1xf32>
    %93 = arith.subf %92, %71 : vector<16x1xf32>
    %94 = vector.broadcast %93 : vector<16x1xf32> to vector<16x32xf32>
    %95 = arith.mulf %91, %94 : vector<16x32xf32>
    %cst_27 = arith.constant dense<0.000000e+00> : vector<16x32xf32>
    %96 = tpu.matmul %69, %30, %cst_27 {dimension_numbers = #tpu.dot_dimension_numbers<[1], [0], [0], [1], [0, 0, 1, 1], [], []>} : vector<16x8xf32>, vector<8x32xf32>, vector<16x32xf32> -> vector<16x32xf32>
    %97 = arith.addf %95, %96 : vector<16x32xf32>
    %cst_28 = arith.constant dense<0.000000e+00> : vector<8x16xf32>
    %98 = tpu.matmul %9, %11, %cst_28 {dimension_numbers = #tpu.dot_dimension_numbers<[1], [0], [0], [1], [0, 0, 1, 1], [], []>} : vector<8x16xf32>, vector<16x16xf32>, vector<8x16xf32> -> vector<8x16xf32>
    %cst_29 = arith.constant dense<0.000000e+00> : vector<8x16xf32>
    %99 = tpu.matmul %36, %98, %cst_29 {dimension_numbers = #tpu.dot_dimension_numbers<[1], [0], [0], [1], [0, 0, 1, 1], [], []>} : vector<8x8xf32>, vector<8x16xf32>, vector<8x16xf32> -> vector<8x16xf32>
    %cst_30 = arith.constant dense<0.000000e+00> : vector<16x32xf32>
    %100 = tpu.matmul %43, %97, %cst_30 {dimension_numbers = #tpu.dot_dimension_numbers<[1], [0], [0], [1], [0, 0, 1, 1], [], []>} : vector<16x16xf32>, vector<16x32xf32>, vector<16x32xf32> -> vector<16x32xf32>
    %101 = vector.extract_strided_slice %100 {offsets = [0, 0], sizes = [8, 32], strides = [1, 1]} : vector<16x32xf32> to vector<8x32xf32>
    %102 = vector.extract_strided_slice %100 {offsets = [8, 0], sizes = [8, 32], strides = [1, 1]} : vector<16x32xf32> to vector<8x32xf32>
    %103 = vector.extract_strided_slice %15 {offsets = [80, 0], sizes = [32, 32], strides = [1, 1]} : vector<160x32xf32> to vector<32x32xf32>
    %104 = vector.extract_strided_slice %15 {offsets = [112, 0], sizes = [32, 32], strides = [1, 1]} : vector<160x32xf32> to vector<32x32xf32>
    %105 = vector.extract_strided_slice %15 {offsets = [144, 0], sizes = [16, 32], strides = [1, 1]} : vector<160x32xf32> to vector<16x32xf32>
    %cst_31 = arith.constant dense<0.000000e+00> : vector<8x32xf32>
    %106 = tpu.matmul %101, %103, %cst_31 {dimension_numbers = #tpu.dot_dimension_numbers<[1], [0], [0], [1], [0, 0, 1, 1], [], []>} : vector<8x32xf32>, vector<32x32xf32>, vector<8x32xf32> -> vector<8x32xf32>
    %cst_32 = arith.constant dense<0.000000e+00> : vector<8x32xf32>
    %107 = tpu.matmul %102, %104, %cst_32 {dimension_numbers = #tpu.dot_dimension_numbers<[1], [0], [0], [1], [0, 0, 1, 1], [], []>} : vector<8x32xf32>, vector<32x32xf32>, vector<8x32xf32> -> vector<8x32xf32>
    %108 = arith.addf %106, %107 : vector<8x32xf32>
    %cst_33 = arith.constant dense<0.000000e+00> : vector<8x32xf32>
    %109 = tpu.matmul %99, %105, %cst_33 {dimension_numbers = #tpu.dot_dimension_numbers<[1], [0], [0], [1], [0, 0, 1, 1], [], []>} : vector<8x16xf32>, vector<16x32xf32>, vector<8x32xf32> -> vector<8x32xf32>
    %110 = arith.addf %108, %109 : vector<8x32xf32>
    %cst_34 = arith.constant 2.000000e-01 : f32
    %111 = vector.broadcast %cst_34 : f32 to vector<8x32xf32>
    %112 = arith.mulf %111, %110 : vector<8x32xf32>
    %113 = arith.maximumf %110, %112 : vector<8x32xf32>
    %cst_35 = arith.constant dense<0.000000e+00> : vector<16x32xf32>
    %114 = tpu.matmul %55, %113, %cst_35 {dimension_numbers = #tpu.dot_dimension_numbers<[1], [0], [0], [1], [0, 0, 1, 1], [], []>} : vector<16x8xf32>, vector<8x32xf32>, vector<16x32xf32> -> vector<16x32xf32>
    %cst_36 = arith.constant 0.000000e+00 : f32
    %115 = vector.broadcast %cst_36 : f32 to vector<16x32xf32>
    %116 = arith.cmpf ogt, %114, %115 : vector<16x32xf32>
    %cst_37 = arith.constant 0.000000e+00 : f32
    %117 = vector.broadcast %cst_37 : f32 to vector<16x32xf32>
    %118 = arith.minimumf %114, %117 : vector<16x32xf32>
    %119 = math.exp %118 : vector<16x32xf32>
    %cst_38 = arith.constant 1.000000e+00 : f32
    %120 = vector.broadcast %cst_38 : f32 to vector<16x32xf32>
    %121 = arith.subf %119, %120 : vector<16x32xf32>
    %122 = arith.select %116, %114, %121 : vector<16x32xi1>, vector<16x32xf32>
    %cst_39 = arith.constant dense<0.000000e+00> : vector<8x32xf32>
    %123 = tpu.matmul %98, %12, %cst_39 {dimension_numbers = #tpu.dot_dimension_numbers<[1], [0], [0], [1], [0, 0, 1, 1], [], []>} : vector<8x16xf32>, vector<16x32xf32>, vector<8x32xf32> -> vector<8x32xf32>
    %cst_40 = arith.constant dense<0.000000e+00> : vector<8x32xf32>
    %124 = tpu.matmul %49, %122, %cst_40 {dimension_numbers = #tpu.dot_dimension_numbers<[1], [0], [0], [1], [0, 0, 1, 1], [], []>} : vector<8x16xf32>, vector<16x32xf32>, vector<8x32xf32> -> vector<8x32xf32>
    %125 = arith.addf %124, %28 : vector<8x32xf32>
    %126 = arith.mulf %125, %125 : vector<8x32xf32>
    %cst_41 = arith.constant dense<0.000000e+00> : vector<8xf32>
    %127 = vector.multi_reduction <add>, %126, %cst_41 [1] : vector<8x32xf32> to vector<8xf32>
    %128 = vector.shape_cast %127 : vector<8xf32> to vector<8x1xf32>
    %cst_42 = arith.constant 1.000000e-24 : f32
    %129 = vector.broadcast %cst_42 : f32 to vector<8x1xf32>
    %130 = arith.maximumf %128, %129 : vector<8x1xf32>
    %131 = math.rsqrt %130 : vector<8x1xf32>
    %132 = vector.broadcast %131 : vector<8x1xf32> to vector<8x32xf32>
    %133 = arith.mulf %125, %132 : vector<8x32xf32>
    %cst_43 = arith.constant 1.000000e+00 : f32
    %134 = vector.broadcast %cst_43 : f32 to vector<32x1xf32>
    %135 = arith.subf %134, %63 : vector<32x1xf32>
    %136 = vector.broadcast %135 : vector<32x1xf32> to vector<32x32xf32>
    %137 = arith.mulf %8, %136 : vector<32x32xf32>
    %cst_44 = arith.constant dense<0.000000e+00> : vector<32x32xf32>
    %138 = tpu.matmul %61, %133, %cst_44 {dimension_numbers = #tpu.dot_dimension_numbers<[1], [0], [0], [1], [0, 0, 1, 1], [], []>} : vector<32x8xf32>, vector<8x32xf32>, vector<32x32xf32> -> vector<32x32xf32>
    %139 = arith.addf %137, %138 : vector<32x32xf32>
    %c0_45 = arith.constant 0 : index
    %c0_46 = arith.constant 0 : index
    %140 = vector.load %arg7[%c0_45, %c0_46] : memref<32x32xf32, #tpu.memory_space<vmem>>, vector<32x32xf32>
    tpu.vector_store %arg7[%c0_45, %c0_46], %139 {strides = array<i32>} : memref<32x32xf32, #tpu.memory_space<vmem>>, vector<32x32xf32>,
    %c0_47 = arith.constant 0 : index
    %c0_48 = arith.constant 0 : index
    %141 = vector.load %arg8[%c0_47, %c0_48] : memref<8x32xf32, #tpu.memory_space<vmem>>, vector<8x32xf32>
    tpu.vector_store %arg8[%c0_47, %c0_48], %123 {strides = array<i32>} : memref<8x32xf32, #tpu.memory_space<vmem>>, vector<8x32xf32>,
    return
  }
  func.func @transform_0(%arg0: i32) -> (i32, i32) {
    %c0_i32 = arith.constant 0 : i32
    %c0_i32_0 = arith.constant 0 : i32
    %c0_i32_1 = arith.constant 0 : i32
    return %c0_i32, %c0_i32_0 : i32, i32
  }
  func.func @transform_1(%arg0: i32) -> (i32, i32) {
    %c0_i32 = arith.constant 0 : i32
    %c0_i32_0 = arith.constant 0 : i32
    %c0_i32_1 = arith.constant 0 : i32
    return %c0_i32, %c0_i32_0 : i32, i32
  }
  func.func @transform_2(%arg0: i32) -> (i32, i32) {
    %c0_i32 = arith.constant 0 : i32
    %c0_i32_0 = arith.constant 0 : i32
    %c0_i32_1 = arith.constant 0 : i32
    return %c0_i32, %c0_i32_0 : i32, i32
  }
  func.func @transform_3(%arg0: i32) -> (i32, i32) {
    %c0_i32 = arith.constant 0 : i32
    %c0_i32_0 = arith.constant 0 : i32
    %c0_i32_1 = arith.constant 0 : i32
    return %c0_i32, %c0_i32_0 : i32, i32
  }
  func.func @transform_4(%arg0: i32) -> (i32, i32) {
    %c0_i32 = arith.constant 0 : i32
    %c0_i32_0 = arith.constant 0 : i32
    %c0_i32_1 = arith.constant 0 : i32
    return %c0_i32, %c0_i32_0 : i32, i32
  }
  func.func @transform_5(%arg0: i32) -> (i32, i32) {
    %c0_i32 = arith.constant 0 : i32
    %c0_i32_0 = arith.constant 0 : i32
    %c0_i32_1 = arith.constant 0 : i32
    return %c0_i32, %c0_i32_0 : i32, i32
  }
  func.func @transform_6(%arg0: i32) -> (i32, i32) {
    %c0_i32 = arith.constant 0 : i32
    %c0_i32_0 = arith.constant 0 : i32
    %c0_i32_1 = arith.constant 0 : i32
    return %c0_i32, %c0_i32_0 : i32, i32
  }
  func.func @transform_7(%arg0: i32) -> (i32, i32) {
    %c0_i32 = arith.constant 0 : i32
    %c0_i32_0 = arith.constant 0 : i32
    %c0_i32_1 = arith.constant 0 : i32
    return %c0_i32, %c0_i32_0 : i32, i32
  }
}

</mosaic_0001>

<llo_original>
// kernel: tpu_custom_call.1
$region0: #{tpu_custom_call.1}
  #allocation0 [shape = 'u32[]', space=smem, size = 0x4, offset = 0x4, fixed_abs, tag = 'smem constant byte address 0x4 - core index']
  #allocation1 [shape = 'u32[144,128]{1,0:T(1,128)}', space=vmem, size = 0x12000, scoped, tag = 'internal scratch']
  %s0 = inlined_call_operand.vmem [shape: f32[32,32], index: 0, kind: input, shape index: {}]
  %s1 = inlined_call_operand.vmem [shape: f32[8,16], index: 1, kind: input, shape index: {}]
  %s2 = inlined_call_operand.vmem [shape: f32[96,32], index: 2, kind: input, shape index: {}]
  %s3 = inlined_call_operand.vmem [shape: f32[160,32], index: 3, kind: input, shape index: {}]
  %s4 = inlined_call_operand.vmem [shape: s32[32,4], index: 4, kind: input, shape index: {}]
  %s5 = inlined_call_operand.vmem [shape: s32[3,8], index: 5, kind: input, shape index: {}]
  %s6 = inlined_call_operand.hbm [shape: f32[32,32], index: 6, kind: output, shape index: {0}]
  %s7 = inlined_call_operand.hbm [shape: f32[8,32], index: 7, kind: output, shape index: {1}]
  %8 = xla_tuple %s6, %s7
  %s9 = sld [smem:[#allocation0]]
  $region42: #{tpu_custom_call.1} parent=0
    _
  %s11 = ssub.s32 1, %s9
  %s12 = scalar_select 0, %s11, %s9
  $region1: #{tpu_custom_call.1} parent=0
    #allocation2 [shape = 'u8[16384]{0}', space=vmem, size = 0x4000, scoped, tag = 'output window, operand 0, single buffered']
    #allocation3 [shape = 's32[1]{0}', space=sflag, size = 0x4, scoped, tag = 'scoped memory for tpu_custom_call.1']
    #allocation4 [shape = 'u8[4096]{0}', space=vmem, size = 0x1000, scoped, tag = 'output window, operand 1, single buffered']
    #allocation5 [shape = 's32[1]{0}', space=sflag, size = 0x4, scoped, tag = 'scoped memory for tpu_custom_call.1']
    %13 = vsyncpa [#allocation3], 0
    %14 = vsyncpa [#allocation5], 0
    // Predicated region
    $region2: #{tpu_custom_call.1} parent=1 // pred_check
      _
    $region3: #{tpu_custom_call.1} parent=1 // pred_check_branch
      %16 = sbr.rel (0) target = $region5
    $region4: #{tpu_custom_call.1} parent=1 // pred_region
      _
    $region5: #{tpu_custom_call.1} parent=1 // pred_fallthru
      _
    // Predicated region
    $region6: #{tpu_custom_call.1} parent=1 // pred_check
      _
    $region7: #{tpu_custom_call.1} parent=1 // pred_check_branch
      %18 = sbr.rel (0) target = $region9
    $region8: #{tpu_custom_call.1} parent=1 // pred_region
      _
    $region9: #{tpu_custom_call.1} parent=1 // pred_fallthru
      _
    // Predicated region
    $region10: #{tpu_custom_call.1} parent=1 // pred_check
      _
    $region11: #{tpu_custom_call.1} parent=1 // pred_check_branch
      %20 = sbr.rel (0) target = $region13
    $region12: #{tpu_custom_call.1} parent=1 // pred_region
      _
    $region13: #{tpu_custom_call.1} parent=1 // pred_fallthru
      _
    // Predicated region
    $region14: #{tpu_custom_call.1} parent=1 // pred_check
      _
    $region15: #{tpu_custom_call.1} parent=1 // pred_check_branch
      %22 = sbr.rel (0) target = $region17
    $region16: #{tpu_custom_call.1} parent=1 // pred_region
      _
    $region17: #{tpu_custom_call.1} parent=1 // pred_fallthru
      _
    // Predicated region
    $region18: #{tpu_custom_call.1} parent=1 // pred_check
      _
    $region19: #{tpu_custom_call.1} parent=1 // pred_check_branch
      %24 = sbr.rel (0) target = $region21
    $region20: #{tpu_custom_call.1} parent=1 // pred_region
      _
    $region21: #{tpu_custom_call.1} parent=1 // pred_fallthru
      _
    // Predicated region
    $region22: #{tpu_custom_call.1} parent=1 // pred_check
      _
    $region23: #{tpu_custom_call.1} parent=1 // pred_check_branch
      %26 = sbr.rel (0) target = $region25
    $region24: #{tpu_custom_call.1} parent=1 // pred_region
      _
    $region25: #{tpu_custom_call.1} parent=1 // pred_fallthru
      _
    %v27 = vld [vmem:[%s0] sm:$0xff]
    %v28 = vld [vmem:[%s0 + $0x8] sm:$0xff]
    %v29 = vld [vmem:[%s0 + $0x10] sm:$0xff]
    %v30 = vld [vmem:[%s0 + $0x18] sm:$0xff]
    %v31 = vmul.f32 %v27, %v27
    %v32 = vmul.f32 %v28, %v28
    %v33 = vmul.f32 %v29, %v29
    %v34 = vmul.f32 %v30, %v30
    %vm35 = vcmask 261120
    %v36 = vsel %vm35, %v31, 0.0
    %37 = vadd.xlane.f32.xlu0 %v36
    %v38 = vpop.xlane.xlu0 %37
    %v39 = vsel %vm35, %v32, 0.0
    %40 = vadd.xlane.f32.xlu0 %v39
    %v41 = vpop.xlane.xlu0 %40
    %v42 = vsel %vm35, %v33, 0.0
    %43 = vadd.xlane.f32.xlu0 %v42
    %v44 = vpop.xlane.xlu0 %43
    %v45 = vsel %vm35, %v34, 0.0
    %46 = vadd.xlane.f32.xlu0 %v45
    %v47 = vpop.xlane.xlu0 %46
    %v48 = vmax.f32 %v38, 1e-24
    %v49 = vmax.f32 %v41, 1e-24
    %v50 = vmax.f32 %v44, 1e-24
    %v51 = vmax.f32 %v47, 1e-24
    %v52 = vrsqrt.pop %v48
    %v53 = vrsqrt.pop %v49
    %v54 = vrsqrt.pop %v50
    %v55 = vrsqrt.pop %v51
    %v56 = vmul.f32 %v27, %v52
    %v57 = vmul.f32 %v28, %v53
    %v58 = vmul.f32 %v29, %v54
    %v59 = vmul.f32 %v30, %v55
    %v60 = vld [vmem:[%s1] sm:$0xff]
    %v61 = vld [vmem:[%s2] sm:$0xff]
    %v62 = vld [vmem:[%s2 + $0x8] sm:$0xff]
    %v63 = vld [vmem:[%s2 + $0x10] sm:$0xff]
    %v64 = vld [vmem:[%s2 + $0x18] sm:$0xff]
    %v65 = vld [vmem:[%s2 + $0x20] sm:$0xff]
    %v66 = vld [vmem:[%s2 + $0x28] sm:$0xff]
    %v67 = vld [vmem:[%s2 + $0x30] sm:$0xff]
    %v68 = vld [vmem:[%s2 + $0x38] sm:$0xff]
    %v69 = vld [vmem:[%s2 + $0x40] sm:$0xff]
    %v70 = vld [vmem:[%s2 + $0x48] sm:$0xff]
    %v71 = vld [vmem:[%s2 + $0x50] sm:$0xff]
    %v72 = vld [vmem:[%s2 + $0x58] sm:$0xff]
    %v73 = vld [vmem:[%s3] sm:$0xff]
    %v74 = vld [vmem:[%s3 + $0x8] sm:$0xff]
    %v75 = vld [vmem:[%s3 + $0x10] sm:$0xff]
    %v76 = vld [vmem:[%s3 + $0x18] sm:$0xff]
    %v77 = vld [vmem:[%s3 + $0x20] sm:$0xff]
    %v78 = vld [vmem:[%s3 + $0x28] sm:$0xff]
    %v79 = vld [vmem:[%s3 + $0x30] sm:$0xff]
    %v80 = vld [vmem:[%s3 + $0x38] sm:$0xff]
    %v81 = vld [vmem:[%s3 + $0x40] sm:$0xff]
    %v82 = vld [vmem:[%s3 + $0x48] sm:$0xff]
    %v83 = vld [vmem:[%s3 + $0x50] sm:$0xff]
    %v84 = vld [vmem:[%s3 + $0x58] sm:$0xff]
    %v85 = vld [vmem:[%s3 + $0x60] sm:$0xff]
    %v86 = vld [vmem:[%s3 + $0x68] sm:$0xff]
    %v87 = vld [vmem:[%s3 + $0x70] sm:$0xff]
    %v88 = vld [vmem:[%s3 + $0x78] sm:$0xff]
    %v89 = vld [vmem:[%s3 + $0x80] sm:$0xff]
    %v90 = vld [vmem:[%s3 + $0x88] sm:$0xff]
    %v91 = vld [vmem:[%s3 + $0x90] sm:$0xff]
    %v92 = vld [vmem:[%s3 + $0x98] sm:$0xff]
    %v93 = vld [vmem:[%s4] sm:$0xff]
    %v94 = vld [vmem:[%s4 + $0x8] sm:$0xff]
    %v95 = vld [vmem:[%s4 + $0x10] sm:$0xff]
    %v96 = vld [vmem:[%s4 + $0x18] sm:$0xff]
    %v97 = vld [vmem:[%s5] sm:$0x7]
    %v98 = vlaneseq
    %v99 = vand.u32 %v98, 127
    %100 = vset.pattern.permute.xlu0 0
    %101 = vperm.xlu0 %100, %v93
    %v102 = vpop.permute.xlu0 %101
    %103 = vset.pattern.permute.xlu0 0
    %104 = vperm.xlu0 %103, %v94
    %v105 = vpop.permute.xlu0 %104
    %106 = vset.pattern.permute.xlu0 0
    %107 = vperm.xlu0 %106, %v95
    %v108 = vpop.permute.xlu0 %107
    %109 = vset.pattern.permute.xlu0 0
    %110 = vperm.xlu0 %109, %v96
    %v111 = vpop.permute.xlu0 %110
    %vm112 = vcmp.eq.s32.totalorder %v99, %v102
    %vm113 = vcmp.eq.s32.totalorder %v99, %v105
    %vm114 = vcmp.eq.s32.totalorder %v99, %v108
    %vm115 = vcmp.eq.s32.totalorder %v99, %v111
    %v116 = vsel %vm112, 1, 0
    %v117 = vsel %vm113, 1, 0
    %v118 = vsel %vm114, 1, 0
    %v119 = vsel %vm115, 1, 0
    %v120 = vcvt.s32.f32 %v116
    %v121 = vcvt.s32.f32 %v117
    %v122 = vcvt.s32.f32 %v118
    %v123 = vcvt.s32.f32 %v119
    %v125 = vsel %vm35, %v120, 0
    %v128 = vsel %vm35, %v121, 0
    %v131 = vsel %vm35, %v122, 0
    %v134 = vsel %vm35, %v123, 0
    %136 = vmatprep.subr.mxu0 0.0
    %137 = vmatpush1.msra.mxu0 %v56
    %138 = vmatprep.subr.mxu0 0.0
    %139 = vmatpush1.msra.mxu0 %v57
    %140 = vmatprep.subr.mxu0 0.0
    %141 = vmatpush1.msra.mxu0 %v58
    %142 = vmatprep.subr.mxu0 0.0
    %143 = vmatpush1.msra.mxu0 %v59
    %144 = vmatprep.subr.mxu0 0.0
    %145 = vmatpush1.msra.mxu0 0.0
    %146 = vmatprep.subr.mxu0 0.0
    %147 = vmatpush1.msra.mxu0 0.0
    %148 = vmatprep.subr.mxu0 0.0
    %149 = vmatpush1.msra.mxu0 0.0
    %150 = vmatprep.subr.mxu0 0.0
    %151 = vmatpush1.msra.mxu0 0.0
    %152 = vmatprep.subr.mxu0 0.0
    %153 = vmatpush1.msra.mxu0 0.0
    %154 = vmatprep.subr.mxu0 0.0
    %155 = vmatpush1.msra.mxu0 0.0
    %156 = vmatprep.subr.mxu0 0.0
    %157 = vmatpush1.msra.mxu0 0.0
    %158 = vmatprep.subr.mxu0 0.0
    %159 = vmatpush1.msra.mxu0 0.0
    %160 = vmatprep.subr.mxu0 0.0
    %161 = vmatpush1.msra.mxu0 0.0
    %162 = vmatprep.subr.mxu0 0.0
    %163 = vmatpush1.msra.mxu0 0.0
    %164 = vmatprep.subr.mxu0 0.0
    %165 = vmatpush1.msra.mxu0 0.0
    %166 = vmatprep.subr.mxu0 0.0
    %167 = vmatpush1.msra.mxu0 0.0
    %168 = vmatprep.subr.mxu0 0.0
    %169 = vmatpush1.msra.mxu0 0.0
    %170 = vmatprep.subr.mxu0 0.0
    %171 = vmatpush1.msra.mxu0 0.0
    %172 = vmatprep.subr.mxu0 0.0
    %173 = vmatpush1.msra.mxu0 0.0
    %174 = vmatprep.subr.mxu0 0.0
    %175 = vmatpush1.msra.mxu0 0.0
    %176 = vmatprep.subr.mxu0 0.0
    %177 = vmatpush1.msra.mxu0 0.0
    %178 = vmatprep.subr.mxu0 0.0
    %179 = vmatpush1.msra.mxu0 0.0
    %180 = vmatprep.subr.mxu0 0.0
    %181 = vmatpush1.msra.mxu0 0.0
    %182 = vmatprep.subr.mxu0 0.0
    %183 = vmatpush1.msra.mxu0 0.0
    %184 = vmatprep.subr.mxu0 0.0
    %185 = vmatpush1.msra.mxu0 0.0
    %186 = vmatprep.subr.mxu0 0.0
    %187 = vmatpush1.msra.mxu0 0.0
    %188 = vmatprep.subr.mxu0 0.0
    %189 = vmatpush1.msra.mxu0 0.0
    %190 = vmatprep.subr.mxu0 0.0
    %191 = vmatpush1.msra.mxu0 0.0
    %192 = vmatprep.subr.mxu0 0.0
    %193 = vmatpush1.msra.mxu0 0.0
    %194 = vmatprep.subr.mxu0 0.0
    %195 = vmatpush1.msra.mxu0 0.0
    %196 = vmatprep.subr.mxu0 0.0
    %197 = vmatpush1.msra.mxu0 0.0
    %198 = vmatprep.subr.mxu0 0.0
    %199 = vmatpush1.msra.mxu0 0.0
    %200 = vmatprep.mubr.f32.mxu0 0.0
    %201 = vmatmul.mubr.f32.gmra.mrb[0].mxu0 %v125
    %v202 = vpop.f32.mrb[0].mxu0
    %v203 = vadd.f32 0.0, %v202
    %v204 = vpop.f32.mrb[0].mxu0
    %205 = vmatprep.mubr.f32.mxu0 0.0
    %206 = vmatmul.mubr.f32.gmra.mrb[0].mxu0 %v128
    %v207 = vpop.f32.mrb[0].mxu0
    %v208 = vadd.f32 0.0, %v207
    %v209 = vpop.f32.mrb[0].mxu0
    %210 = vmatprep.mubr.f32.mxu0 0.0
    %211 = vmatmul.mubr.f32.gmra.mrb[0].mxu0 %v131
    %v212 = vpop.f32.mrb[0].mxu0
    %v213 = vadd.f32 0.0, %v212
    %v214 = vpop.f32.mrb[0].mxu0
    %215 = vmatprep.mubr.f32.mxu0 0.0
    %216 = vmatmul.mubr.f32.gmra.mrb[0].mxu0 %v134
    %v217 = vpop.f32.mrb[0].mxu0
    %v218 = vadd.f32 0.0, %v217
    %v219 = vpop.f32.mrb[0].mxu0
    %220 = vdwg.mxu0
    %v222 = vsel %vm35, %v213, 0
    %224 = vmatprep.subr.mxu0 0.0
    %225 = vmatpush1.msra.mxu0 %v69
    %226 = vmatprep.subr.mxu0 0.0
    %227 = vmatpush1.msra.mxu0 %v70
    %228 = vmatprep.subr.mxu0 0.0
    %229 = vmatpush1.msra.mxu0 %v71
    %230 = vmatprep.subr.mxu0 0.0
    %231 = vmatpush1.msra.mxu0 %v72
    %232 = vmatprep.subr.mxu0 0.0
    %233 = vmatpush1.msra.mxu0 0.0
    %234 = vmatprep.subr.mxu0 0.0
    %235 = vmatpush1.msra.mxu0 0.0
    %236 = vmatprep.subr.mxu0 0.0
    %237 = vmatpush1.msra.mxu0 0.0
    %238 = vmatprep.subr.mxu0 0.0
    %239 = vmatpush1.msra.mxu0 0.0
    %240 = vmatprep.subr.mxu0 0.0
    %241 = vmatpush1.msra.mxu0 0.0
    %242 = vmatprep.subr.mxu0 0.0
    %243 = vmatpush1.msra.mxu0 0.0
    %244 = vmatprep.subr.mxu0 0.0
    %245 = vmatpush1.msra.mxu0 0.0
    %246 = vmatprep.subr.mxu0 0.0
    %247 = vmatpush1.msra.mxu0 0.0
    %248 = vmatprep.subr.mxu0 0.0
    %249 = vmatpush1.msra.mxu0 0.0
    %250 = vmatprep.subr.mxu0 0.0
    %251 = vmatpush1.msra.mxu0 0.0
    %252 = vmatprep.subr.mxu0 0.0
    %253 = vmatpush1.msra.mxu0 0.0
    %254 = vmatprep.subr.mxu0 0.0
    %255 = vmatpush1.msra.mxu0 0.0
    %256 = vmatprep.subr.mxu0 0.0
    %257 = vmatpush1.msra.mxu0 0.0
    %258 = vmatprep.subr.mxu0 0.0
    %259 = vmatpush1.msra.mxu0 0.0
    %260 = vmatprep.subr.mxu0 0.0
    %261 = vmatpush1.msra.mxu0 0.0
    %262 = vmatprep.subr.mxu0 0.0
    %263 = vmatpush1.msra.mxu0 0.0
    %264 = vmatprep.subr.mxu0 0.0
    %265 = vmatpush1.msra.mxu0 0.0
    %266 = vmatprep.subr.mxu0 0.0
    %267 = vmatpush1.msra.mxu0 0.0
    %268 = vmatprep.subr.mxu0 0.0
    %269 = vmatpush1.msra.mxu0 0.0
    %270 = vmatprep.subr.mxu0 0.0
    %271 = vmatpush1.msra.mxu0 0.0
    %272 = vmatprep.subr.mxu0 0.0
    %273 = vmatpush1.msra.mxu0 0.0
    %274 = vmatprep.subr.mxu0 0.0
    %275 = vmatpush1.msra.mxu0 0.0
    %276 = vmatprep.subr.mxu0 0.0
    %277 = vmatpush1.msra.mxu0 0.0
    %278 = vmatprep.subr.mxu0 0.0
    %279 = vmatpush1.msra.mxu0 0.0
    %280 = vmatprep.subr.mxu0 0.0
    %281 = vmatpush1.msra.mxu0 0.0
    %282 = vmatprep.subr.mxu0 0.0
    %283 = vmatpush1.msra.mxu0 0.0
    %284 = vmatprep.subr.mxu0 0.0
    %285 = vmatpush1.msra.mxu0 0.0
    %286 = vmatprep.subr.mxu0 0.0
    %287 = vmatpush1.msra.mxu0 0.0
    %288 = vmatprep.mubr.f32.mxu0 0.0
    %289 = vmatmul.mubr.f32.gmra.mrb[0].mxu0 %v222
    %v290 = vpop.f32.mrb[0].mxu0
    %v291 = vadd.f32 0.0, %v290
    %v292 = vpop.f32.mrb[0].mxu0
    %293 = vdwg.mxu0
    %v295 = vsel %vm35, %v218, 0
    %297 = vmatprep.subr.mxu0 0.0
    %298 = vmatpush1.msra.mxu0 %v65
    %299 = vmatprep.subr.mxu0 0.0
    %300 = vmatpush1.msra.mxu0 %v66
    %301 = vmatprep.subr.mxu0 0.0
    %302 = vmatpush1.msra.mxu0 %v67
    %303 = vmatprep.subr.mxu0 0.0
    %304 = vmatpush1.msra.mxu0 %v68
    %305 = vmatprep.subr.mxu0 0.0
    %306 = vmatpush1.msra.mxu0 0.0
    %307 = vmatprep.subr.mxu0 0.0
    %308 = vmatpush1.msra.mxu0 0.0
    %309 = vmatprep.subr.mxu0 0.0
    %310 = vmatpush1.msra.mxu0 0.0
    %311 = vmatprep.subr.mxu0 0.0
    %312 = vmatpush1.msra.mxu0 0.0
    %313 = vmatprep.subr.mxu0 0.0
    %314 = vmatpush1.msra.mxu0 0.0
    %315 = vmatprep.subr.mxu0 0.0
    %316 = vmatpush1.msra.mxu0 0.0
    %317 = vmatprep.subr.mxu0 0.0
    %318 = vmatpush1.msra.mxu0 0.0
    %319 = vmatprep.subr.mxu0 0.0
    %320 = vmatpush1.msra.mxu0 0.0
    %321 = vmatprep.subr.mxu0 0.0
    %322 = vmatpush1.msra.mxu0 0.0
    %323 = vmatprep.subr.mxu0 0.0
    %324 = vmatpush1.msra.mxu0 0.0
    %325 = vmatprep.subr.mxu0 0.0
    %326 = vmatpush1.msra.mxu0 0.0
    %327 = vmatprep.subr.mxu0 0.0
    %328 = vmatpush1.msra.mxu0 0.0
    %329 = vmatprep.subr.mxu0 0.0
    %330 = vmatpush1.msra.mxu0 0.0
    %331 = vmatprep.subr.mxu0 0.0
    %332 = vmatpush1.msra.mxu0 0.0
    %333 = vmatprep.subr.mxu0 0.0
    %334 = vmatpush1.msra.mxu0 0.0
    %335 = vmatprep.subr.mxu0 0.0
    %336 = vmatpush1.msra.mxu0 0.0
    %337 = vmatprep.subr.mxu0 0.0
    %338 = vmatpush1.msra.mxu0 0.0
    %339 = vmatprep.subr.mxu0 0.0
    %340 = vmatpush1.msra.mxu0 0.0
    %341 = vmatprep.subr.mxu0 0.0
    %342 = vmatpush1.msra.mxu0 0.0
    %343 = vmatprep.subr.mxu0 0.0
    %344 = vmatpush1.msra.mxu0 0.0
    %345 = vmatprep.subr.mxu0 0.0
    %346 = vmatpush1.msra.mxu0 0.0
    %347 = vmatprep.subr.mxu0 0.0
    %348 = vmatpush1.msra.mxu0 0.0
    %349 = vmatprep.subr.mxu0 0.0
    %350 = vmatpush1.msra.mxu0 0.0
    %351 = vmatprep.subr.mxu0 0.0
    %352 = vmatpush1.msra.mxu0 0.0
    %353 = vmatprep.subr.mxu0 0.0
    %354 = vmatpush1.msra.mxu0 0.0
    %355 = vmatprep.subr.mxu0 0.0
    %356 = vmatpush1.msra.mxu0 0.0
    %357 = vmatprep.subr.mxu0 0.0
    %358 = vmatpush1.msra.mxu0 0.0
    %359 = vmatprep.subr.mxu0 0.0
    %360 = vmatpush1.msra.mxu0 0.0
    %361 = vmatprep.mubr.f32.mxu0 0.0
    %362 = vmatmul.mubr.f32.gmra.mrb[0].mxu0 %v295
    %v363 = vpop.f32.mrb[0].mxu0
    %v364 = vadd.f32 0.0, %v363
    %v365 = vpop.f32.mrb[0].mxu0
    %366 = vdwg.mxu0
    %367 = vset.pattern.permute.xlu0 1
    %368 = vperm.xlu0 %367, %v93
    %v369 = vpop.permute.xlu0 %368
    %vm370 = vcmp.eq.s32.totalorder %v99, %v369
    %v371 = vsel %vm370, 1, 0
    %v372 = vcvt.s32.f32 %v371
    %vm373 = vcmask 64512
    %v375 = vsel %vm373, %v372, 0
    %377 = vmatprep.subr.mxu0 0.0
    %378 = vmatpush1.msra.mxu0 %v60
    %379 = vmatprep.subr.mxu0 0.0
    %380 = vmatpush1.msra.mxu0 0.0
    %381 = vmatprep.subr.mxu0 0.0
    %382 = vmatpush1.msra.mxu0 0.0
    %383 = vmatprep.subr.mxu0 0.0
    %384 = vmatpush1.msra.mxu0 0.0
    %385 = vmatprep.subr.mxu0 0.0
    %386 = vmatpush1.msra.mxu0 0.0
    %387 = vmatprep.subr.mxu0 0.0
    %388 = vmatpush1.msra.mxu0 0.0
    %389 = vmatprep.subr.mxu0 0.0
    %390 = vmatpush1.msra.mxu0 0.0
    %391 = vmatprep.subr.mxu0 0.0
    %392 = vmatpush1.msra.mxu0 0.0
    %393 = vmatprep.subr.mxu0 0.0
    %394 = vmatpush1.msra.mxu0 0.0
    %395 = vmatprep.subr.mxu0 0.0
    %396 = vmatpush1.msra.mxu0 0.0
    %397 = vmatprep.subr.mxu0 0.0
    %398 = vmatpush1.msra.mxu0 0.0
    %399 = vmatprep.subr.mxu0 0.0
    %400 = vmatpush1.msra.mxu0 0.0
    %401 = vmatprep.subr.mxu0 0.0
    %402 = vmatpush1.msra.mxu0 0.0
    %403 = vmatprep.subr.mxu0 0.0
    %404 = vmatpush1.msra.mxu0 0.0
    %405 = vmatprep.subr.mxu0 0.0
    %406 = vmatpush1.msra.mxu0 0.0
    %407 = vmatprep.subr.mxu0 0.0
    %408 = vmatpush1.msra.mxu0 0.0
    %409 = vmatprep.subr.mxu0 0.0
    %410 = vmatpush1.msra.mxu0 0.0
    %411 = vmatprep.subr.mxu0 0.0
    %412 = vmatpush1.msra.mxu0 0.0
    %413 = vmatprep.subr.mxu0 0.0
    %414 = vmatpush1.msra.mxu0 0.0
    %415 = vmatprep.subr.mxu0 0.0
    %416 = vmatpush1.msra.mxu0 0.0
    %417 = vmatprep.subr.mxu0 0.0
    %418 = vmatpush1.msra.mxu0 0.0
    %419 = vmatprep.subr.mxu0 0.0
    %420 = vmatpush1.msra.mxu0 0.0
    %421 = vmatprep.subr.mxu0 0.0
    %422 = vmatpush1.msra.mxu0 0.0
    %423 = vmatprep.subr.mxu0 0.0
    %424 = vmatpush1.msra.mxu0 0.0
    %425 = vmatprep.subr.mxu0 0.0
    %426 = vmatpush1.msra.mxu0 0.0
    %427 = vmatprep.subr.mxu0 0.0
    %428 = vmatpush1.msra.mxu0 0.0
    %429 = vmatprep.subr.mxu0 0.0
    %430 = vmatpush1.msra.mxu0 0.0
    %431 = vmatprep.subr.mxu0 0.0
    %432 = vmatpush1.msra.mxu0 0.0
    %433 = vmatprep.subr.mxu0 0.0
    %434 = vmatpush1.msra.mxu0 0.0
    %435 = vmatprep.subr.mxu0 0.0
    %436 = vmatpush1.msra.mxu0 0.0
    %437 = vmatprep.subr.mxu0 0.0
    %438 = vmatpush1.msra.mxu0 0.0
    %439 = vmatprep.subr.mxu0 0.0
    %440 = vmatpush1.msra.mxu0 0.0
    %441 = vmatprep.mubr.f32.mxu0 0.0
    %442 = vmatmul.mubr.f32.gmra.mrb[0].mxu0 %v375
    %v443 = vpop.f32.mrb[0].mxu0
    %v444 = vadd.f32 0.0, %v443
    %v445 = vpop.f32.mrb[0].mxu0
    %446 = vdwg.mxu0
    %447 = vset.pattern.permute.xlu0 2
    %448 = vperm.xlu0 %447, %v93
    %v449 = vpop.permute.xlu0 %448
    %450 = vset.pattern.permute.xlu0 2
    %451 = vperm.xlu0 %450, %v94
    %v452 = vpop.permute.xlu0 %451
    %vm453 = vcmp.eq.s32.totalorder %v99, %v449
    %vm454 = vcmp.eq.s32.totalorder %v99, %v452
    %v455 = vsel %vm453, 1, 0
    %v456 = vsel %vm454, 1, 0
    %v457 = vcvt.s32.f32 %v455
    %v458 = vcvt.s32.f32 %v456
    %459 = vset.pattern.permute.xlu0 3
    %460 = vperm.xlu0 %459, %v93
    %v461 = vpop.permute.xlu0 %460
    %vm462 = vcmp.eq.s32.totalorder %v99, %v461
    %v463 = vsel %vm462, 1, 0
    %v464 = vcvt.s32.f32 %v463
    %v465 = vlaneseq
    %v466 = vshrl.u32 %v465, 7
    %v467 = vadd.s32 %v466, 8
    %v468 = vlaneseq
    %v469 = vshrl.u32 %v468, 7
    %v470 = vsub.s32 0, %v469
    %v471 = vrot.slane %v97, %v470
    %vm472 = vcmp.eq.s32.totalorder %v466, %v471
    %vm473 = vcmp.eq.s32.totalorder %v467, %v471
    %v474 = vsel %vm472, 1, 0
    %v475 = vsel %vm473, 1, 0
    %v476 = vcvt.s32.f32 %v474
    %v477 = vcvt.s32.f32 %v475
    %v478 = vadd.s32 %v466, 16
    %v479 = vadd.s32 %v466, 24
    %v480 = vlaneseq
    %v481 = vshrl.u32 %v480, 7
    %v482 = vsub.s32 1, %v481
    %v483 = vrot.slane %v97, %v482
    %vm484 = vcmp.eq.s32.totalorder %v466, %v483
    %vm485 = vcmp.eq.s32.totalorder %v467, %v483
    %vm486 = vcmp.eq.s32.totalorder %v478, %v483
    %vm487 = vcmp.eq.s32.totalorder %v479, %v483
    %v488 = vsel %vm484, 1, 0
    %v489 = vsel %vm485, 1, 0
    %v490 = vsel %vm486, 1, 0
    %v491 = vsel %vm487, 1, 0
    %v492 = vcvt.s32.f32 %v488
    %v493 = vcvt.s32.f32 %v489
    %v494 = vcvt.s32.f32 %v490
    %v495 = vcvt.s32.f32 %v491
    %v496 = vsel %vm373, %v492, 0.0
    %497 = vadd.xlane.f32.xlu0 %v496
    %v498 = vpop.xlane.xlu0 %497
    %v499 = vsel %vm373, %v493, 0.0
    %500 = vadd.xlane.f32.xlu0 %v499
    %v501 = vpop.xlane.xlu0 %500
    %v502 = vsel %vm373, %v494, 0.0
    %503 = vadd.xlane.f32.xlu0 %v502
    %v504 = vpop.xlane.xlu0 %503
    %v505 = vsel %vm373, %v495, 0.0
    %506 = vadd.xlane.f32.xlu0 %v505
    %v507 = vpop.xlane.xlu0 %506
    %v508 = vlaneseq
    %v509 = vshrl.u32 %v508, 7
    %v510 = vsub.s32 2, %v509
    %v511 = vrot.slane %v97, %v510
    %vm512 = vcmp.eq.s32.totalorder %v466, %v511
    %vm513 = vcmp.eq.s32.totalorder %v467, %v511
    %v514 = vsel %vm512, 1, 0
    %v515 = vsel %vm513, 1, 0
    %v516 = vcvt.s32.f32 %v514
    %v517 = vcvt.s32.f32 %v515
    %v518 = vsel %vm373, %v516, 0.0
    %519 = vadd.xlane.f32.xlu0 %v518
    %v520 = vpop.xlane.xlu0 %519
    %v521 = vsel %vm373, %v517, 0.0
    %522 = vadd.xlane.f32.xlu0 %v521
    %v523 = vpop.xlane.xlu0 %522
    %v525 = vsel %vm35, %v208, 0
    %527 = vmatprep.subr.mxu0 0.0
    %528 = vmatpush1.msra.mxu0 %v77
    %529 = vmatprep.subr.mxu0 0.0
    %530 = vmatpush1.msra.mxu0 %v78
    %531 = vmatprep.subr.mxu0 0.0
    %532 = vmatpush1.msra.mxu0 %v79
    %533 = vmatprep.subr.mxu0 0.0
    %534 = vmatpush1.msra.mxu0 %v80
    %535 = vmatprep.subr.mxu0 0.0
    %536 = vmatpush1.msra.mxu0 0.0
    %537 = vmatprep.subr.mxu0 0.0
    %538 = vmatpush1.msra.mxu0 0.0
    %539 = vmatprep.subr.mxu0 0.0
    %540 = vmatpush1.msra.mxu0 0.0
    %541 = vmatprep.subr.mxu0 0.0
    %542 = vmatpush1.msra.mxu0 0.0
    %543 = vmatprep.subr.mxu0 0.0
    %544 = vmatpush1.msra.mxu0 0.0
    %545 = vmatprep.subr.mxu0 0.0
    %546 = vmatpush1.msra.mxu0 0.0
    %547 = vmatprep.subr.mxu0 0.0
    %548 = vmatpush1.msra.mxu0 0.0
    %549 = vmatprep.subr.mxu0 0.0
    %550 = vmatpush1.msra.mxu0 0.0
    %551 = vmatprep.subr.mxu0 0.0
    %552 = vmatpush1.msra.mxu0 0.0
    %553 = vmatprep.subr.mxu0 0.0
    %554 = vmatpush1.msra.mxu0 0.0
    %555 = vmatprep.subr.mxu0 0.0
    %556 = vmatpush1.msra.mxu0 0.0
    %557 = vmatprep.subr.mxu0 0.0
    %558 = vmatpush1.msra.mxu0 0.0
    %559 = vmatprep.subr.mxu0 0.0
    %560 = vmatpush1.msra.mxu0 0.0
    %561 = vmatprep.subr.mxu0 0.0
    %562 = vmatpush1.msra.mxu0 0.0
    %563 = vmatprep.subr.mxu0 0.0
    %564 = vmatpush1.msra.mxu0 0.0
    %565 = vmatprep.subr.mxu0 0.0
    %566 = vmatpush1.msra.mxu0 0.0
    %567 = vmatprep.subr.mxu0 0.0
    %568 = vmatpush1.msra.mxu0 0.0
    %569 = vmatprep.subr.mxu0 0.0
    %570 = vmatpush1.msra.mxu0 0.0
    %571 = vmatprep.subr.mxu0 0.0
    %572 = vmatpush1.msra.mxu0 0.0
    %573 = vmatprep.subr.mxu0 0.0
    %574 = vmatpush1.msra.mxu0 0.0
    %575 = vmatprep.subr.mxu0 0.0
    %576 = vmatpush1.msra.mxu0 0.0
    %577 = vmatprep.subr.mxu0 0.0
    %578 = vmatpush1.msra.mxu0 0.0
    %579 = vmatprep.subr.mxu0 0.0
    %580 = vmatpush1.msra.mxu0 0.0
    %581 = vmatprep.subr.mxu0 0.0
    %582 = vmatpush1.msra.mxu0 0.0
    %583 = vmatprep.subr.mxu0 0.0
    %584 = vmatpush1.msra.mxu0 0.0
    %585 = vmatprep.subr.mxu0 0.0
    %586 = vmatpush1.msra.mxu0 0.0
    %587 = vmatprep.subr.mxu0 0.0
    %588 = vmatpush1.msra.mxu0 0.0
    %589 = vmatprep.subr.mxu0 0.0
    %590 = vmatpush1.msra.mxu0 0.0
    %591 = vmatprep.mubr.f32.mxu0 0.0
    %592 = vmatmul.mubr.f32.gmra.mrb[0].mxu0 %v525
    %v593 = vpop.f32.mrb[0].mxu0
    %v594 = vadd.f32 0.0, %v593
    %v595 = vpop.f32.mrb[0].mxu0
    %596 = vdwg.mxu0
    %v598 = vsel %vm35, %v203, 0
    %600 = vmatprep.subr.mxu0 0.0
    %601 = vmatpush1.msra.mxu0 %v73
    %602 = vmatprep.subr.mxu0 0.0
    %603 = vmatpush1.msra.mxu0 %v74
    %604 = vmatprep.subr.mxu0 0.0
    %605 = vmatpush1.msra.mxu0 %v75
    %606 = vmatprep.subr.mxu0 0.0
    %607 = vmatpush1.msra.mxu0 %v76
    %608 = vmatprep.subr.mxu0 0.0
    %609 = vmatpush1.msra.mxu0 0.0
    %610 = vmatprep.subr.mxu0 0.0
    %611 = vmatpush1.msra.mxu0 0.0
    %612 = vmatprep.subr.mxu0 0.0
    %613 = vmatpush1.msra.mxu0 0.0
    %614 = vmatprep.subr.mxu0 0.0
    %615 = vmatpush1.msra.mxu0 0.0
    %616 = vmatprep.subr.mxu0 0.0
    %617 = vmatpush1.msra.mxu0 0.0
    %618 = vmatprep.subr.mxu0 0.0
    %619 = vmatpush1.msra.mxu0 0.0
    %620 = vmatprep.subr.mxu0 0.0
    %621 = vmatpush1.msra.mxu0 0.0
    %622 = vmatprep.subr.mxu0 0.0
    %623 = vmatpush1.msra.mxu0 0.0
    %624 = vmatprep.subr.mxu0 0.0
    %625 = vmatpush1.msra.mxu0 0.0
    %626 = vmatprep.subr.mxu0 0.0
    %627 = vmatpush1.msra.mxu0 0.0
    %628 = vmatprep.subr.mxu0 0.0
    %629 = vmatpush1.msra.mxu0 0.0
    %630 = vmatprep.subr.mxu0 0.0
    %631 = vmatpush1.msra.mxu0 0.0
    %632 = vmatprep.subr.mxu0 0.0
    %633 = vmatpush1.msra.mxu0 0.0
    %634 = vmatprep.subr.mxu0 0.0
    %635 = vmatpush1.msra.mxu0 0.0
    %636 = vmatprep.subr.mxu0 0.0
    %637 = vmatpush1.msra.mxu0 0.0
    %638 = vmatprep.subr.mxu0 0.0
    %639 = vmatpush1.msra.mxu0 0.0
    %640 = vmatprep.subr.mxu0 0.0
    %641 = vmatpush1.msra.mxu0 0.0
    %642 = vmatprep.subr.mxu0 0.0
    %643 = vmatpush1.msra.mxu0 0.0
    %644 = vmatprep.subr.mxu0 0.0
    %645 = vmatpush1.msra.mxu0 0.0
    %646 = vmatprep.subr.mxu0 0.0
    %647 = vmatpush1.msra.mxu0 0.0
    %648 = vmatprep.subr.mxu0 0.0
    %649 = vmatpush1.msra.mxu0 0.0
    %650 = vmatprep.subr.mxu0 0.0
    %651 = vmatpush1.msra.mxu0 0.0
    %652 = vmatprep.subr.mxu0 0.0
    %653 = vmatpush1.msra.mxu0 0.0
    %654 = vmatprep.subr.mxu0 0.0
    %655 = vmatpush1.msra.mxu0 0.0
    %656 = vmatprep.subr.mxu0 0.0
    %657 = vmatpush1.msra.mxu0 0.0
    %658 = vmatprep.subr.mxu0 0.0
    %659 = vmatpush1.msra.mxu0 0.0
    %660 = vmatprep.subr.mxu0 0.0
    %661 = vmatpush1.msra.mxu0 0.0
    %662 = vmatprep.subr.mxu0 0.0
    %663 = vmatpush1.msra.mxu0 0.0
    %664 = vmatprep.mubr.f32.mxu0 0.0
    %665 = vmatmul.mubr.f32.gmra.mrb[0].mxu0 %v598
    %v666 = vpop.f32.mrb[0].mxu0
    %v667 = vadd.f32 %v594, %v666
    %v668 = vpop.f32.mrb[0].mxu0
    %669 = vdwg.mxu0
    %vm670 = vcmask 130048
    %v672 = vsel %vm670, %v444, 0
    %674 = vmatprep.subr.mxu0 0.0
    %675 = vmatpush1.msra.mxu0 %v81
    %676 = vmatprep.subr.mxu0 0.0
    %677 = vmatpush1.msra.mxu0 %v82
    %678 = vmatprep.subr.mxu0 0.0
    %679 = vmatpush1.msra.mxu0 0.0
    %680 = vmatprep.subr.mxu0 0.0
    %681 = vmatpush1.msra.mxu0 0.0
    %682 = vmatprep.subr.mxu0 0.0
    %683 = vmatpush1.msra.mxu0 0.0
    %684 = vmatprep.subr.mxu0 0.0
    %685 = vmatpush1.msra.mxu0 0.0
    %686 = vmatprep.subr.mxu0 0.0
    %687 = vmatpush1.msra.mxu0 0.0
    %688 = vmatprep.subr.mxu0 0.0
    %689 = vmatpush1.msra.mxu0 0.0
    %690 = vmatprep.subr.mxu0 0.0
    %691 = vmatpush1.msra.mxu0 0.0
    %692 = vmatprep.subr.mxu0 0.0
    %693 = vmatpush1.msra.mxu0 0.0
    %694 = vmatprep.subr.mxu0 0.0
    %695 = vmatpush1.msra.mxu0 0.0
    %696 = vmatprep.subr.mxu0 0.0
    %697 = vmatpush1.msra.mxu0 0.0
    %698 = vmatprep.subr.mxu0 0.0
    %699 = vmatpush1.msra.mxu0 0.0
    %700 = vmatprep.subr.mxu0 0.0
    %701 = vmatpush1.msra.mxu0 0.0
    %702 = vmatprep.subr.mxu0 0.0
    %703 = vmatpush1.msra.mxu0 0.0
    %704 = vmatprep.subr.mxu0 0.0
    %705 = vmatpush1.msra.mxu0 0.0
    %706 = vmatprep.subr.mxu0 0.0
    %707 = vmatpush1.msra.mxu0 0.0
    %708 = vmatprep.subr.mxu0 0.0
    %709 = vmatpush1.msra.mxu0 0.0
    %710 = vmatprep.subr.mxu0 0.0
    %711 = vmatpush1.msra.mxu0 0.0
    %712 = vmatprep.subr.mxu0 0.0
    %713 = vmatpush1.msra.mxu0 0.0
    %714 = vmatprep.subr.mxu0 0.0
    %715 = vmatpush1.msra.mxu0 0.0
    %716 = vmatprep.subr.mxu0 0.0
    %717 = vmatpush1.msra.mxu0 0.0
    %718 = vmatprep.subr.mxu0 0.0
    %719 = vmatpush1.msra.mxu0 0.0
    %720 = vmatprep.subr.mxu0 0.0
    %721 = vmatpush1.msra.mxu0 0.0
    %722 = vmatprep.subr.mxu0 0.0
    %723 = vmatpush1.msra.mxu0 0.0
    %724 = vmatprep.subr.mxu0 0.0
    %725 = vmatpush1.msra.mxu0 0.0
    %726 = vmatprep.subr.mxu0 0.0
    %727 = vmatpush1.msra.mxu0 0.0
    %728 = vmatprep.subr.mxu0 0.0
    %729 = vmatpush1.msra.mxu0 0.0
    %730 = vmatprep.subr.mxu0 0.0
    %731 = vmatpush1.msra.mxu0 0.0
    %732 = vmatprep.subr.mxu0 0.0
    %733 = vmatpush1.msra.mxu0 0.0
    %734 = vmatprep.subr.mxu0 0.0
    %735 = vmatpush1.msra.mxu0 0.0
    %736 = vmatprep.subr.mxu0 0.0
    %737 = vmatpush1.msra.mxu0 0.0
    %738 = vmatprep.mubr.f32.mxu0 0.0
    %739 = vmatmul.mubr.f32.gmra.mrb[0].mxu0 %v672
    %v740 = vpop.f32.mrb[0].mxu0
    %v741 = vadd.f32 0.0, %v740
    %v742 = vpop.f32.mrb[0].mxu0
    %743 = vdwg.mxu0
    %v744 = vadd.f32 %v667, %v741
    %v745 = vmul.f32 %v744, 0.2
    %v746 = vmax.f32 %v744, %v745
    %v748 = vsel %vm373, %v476, 0
    %v751 = vsel %vm373, %v477, 0
    %753 = vmatprep.subr.mxu0 0.0
    %754 = vmatpush1.msra.mxu0 %v746
    %755 = vmatprep.subr.mxu0 0.0
    %756 = vmatpush1.msra.mxu0 0.0
    %757 = vmatprep.subr.mxu0 0.0
    %758 = vmatpush1.msra.mxu0 0.0
    %759 = vmatprep.subr.mxu0 0.0
    %760 = vmatpush1.msra.mxu0 0.0
    %761 = vmatprep.subr.mxu0 0.0
    %762 = vmatpush1.msra.mxu0 0.0
    %763 = vmatprep.subr.mxu0 0.0
    %764 = vmatpush1.msra.mxu0 0.0
    %765 = vmatprep.subr.mxu0 0.0
    %766 = vmatpush1.msra.mxu0 0.0
    %767 = vmatprep.subr.mxu0 0.0
    %768 = vmatpush1.msra.mxu0 0.0
    %769 = vmatprep.subr.mxu0 0.0
    %770 = vmatpush1.msra.mxu0 0.0
    %771 = vmatprep.subr.mxu0 0.0
    %772 = vmatpush1.msra.mxu0 0.0
    %773 = vmatprep.subr.mxu0 0.0
    %774 = vmatpush1.msra.mxu0 0.0
    %775 = vmatprep.subr.mxu0 0.0
    %776 = vmatpush1.msra.mxu0 0.0
    %777 = vmatprep.subr.mxu0 0.0
    %778 = vmatpush1.msra.mxu0 0.0
    %779 = vmatprep.subr.mxu0 0.0
    %780 = vmatpush1.msra.mxu0 0.0
    %781 = vmatprep.subr.mxu0 0.0
    %782 = vmatpush1.msra.mxu0 0.0
    %783 = vmatprep.subr.mxu0 0.0
    %784 = vmatpush1.msra.mxu0 0.0
    %785 = vmatprep.subr.mxu0 0.0
    %786 = vmatpush1.msra.mxu0 0.0
    %787 = vmatprep.subr.mxu0 0.0
    %788 = vmatpush1.msra.mxu0 0.0
    %789 = vmatprep.subr.mxu0 0.0
    %790 = vmatpush1.msra.mxu0 0.0
    %791 = vmatprep.subr.mxu0 0.0
    %792 = vmatpush1.msra.mxu0 0.0
    %793 = vmatprep.subr.mxu0 0.0
    %794 = vmatpush1.msra.mxu0 0.0
    %795 = vmatprep.subr.mxu0 0.0
    %796 = vmatpush1.msra.mxu0 0.0
    %797 = vmatprep.subr.mxu0 0.0
    %798 = vmatpush1.msra.mxu0 0.0
    %799 = vmatprep.subr.mxu0 0.0
    %800 = vmatpush1.msra.mxu0 0.0
    %801 = vmatprep.subr.mxu0 0.0
    %802 = vmatpush1.msra.mxu0 0.0
    %803 = vmatprep.subr.mxu0 0.0
    %804 = vmatpush1.msra.mxu0 0.0
    %805 = vmatprep.subr.mxu0 0.0
    %806 = vmatpush1.msra.mxu0 0.0
    %807 = vmatprep.subr.mxu0 0.0
    %808 = vmatpush1.msra.mxu0 0.0
    %809 = vmatprep.subr.mxu0 0.0
    %810 = vmatpush1.msra.mxu0 0.0
    %811 = vmatprep.subr.mxu0 0.0
    %812 = vmatpush1.msra.mxu0 0.0
    %813 = vmatprep.subr.mxu0 0.0
    %814 = vmatpush1.msra.mxu0 0.0
    %815 = vmatprep.subr.mxu0 0.0
    %816 = vmatpush1.msra.mxu0 0.0
    %817 = vmatprep.mubr.f32.mxu0 0.0
    %818 = vmatmul.mubr.f32.gmra.mrb[0].mxu0 %v748
    %v819 = vpop.f32.mrb[0].mxu0
    %v820 = vadd.f32 0.0, %v819
    %v821 = vpop.f32.mrb[0].mxu0
    %822 = vmatprep.mubr.f32.mxu0 0.0
    %823 = vmatmul.mubr.f32.gmra.mrb[0].mxu0 %v751
    %v824 = vpop.f32.mrb[0].mxu0
    %v825 = vadd.f32 0.0, %v824
    %v826 = vpop.f32.mrb[0].mxu0
    %827 = vdwg.mxu0
    %vm828 = vcmp.gt.f32.partialorder %v820, 0.0
    %vm829 = vcmp.gt.f32.partialorder %v825, 0.0
    %v830 = vmin.f32 %v820, 0.0
    %v831 = vmin.f32 %v825, 0.0
    %v832 = vmul.f32 %v830, 1.442695
    %v833 = vpow.pop %v832
    %v834 = vmul.f32 %v831, 1.442695
    %v835 = vpow.pop %v834
    %v836 = vsub.f32 %v833, 1.0
    %v837 = vsub.f32 %v835, 1.0
    %v838 = vsel %vm828, %v820, %v836
    %v839 = vsel %vm829, %v825, %v837
    %v840 = vsub.f32 1.0, %v520
    %v841 = vsub.f32 1.0, %v523
    %v842 = vmul.f32 %v838, %v840
    %v843 = vmul.f32 %v839, %v841
    %v845 = vsel %vm373, %v516, 0
    %v848 = vsel %vm373, %v517, 0
    %850 = vmatprep.subr.mxu0 0.0
    %851 = vmatpush1.msra.mxu0 %v364
    %852 = vmatprep.subr.mxu0 0.0
    %853 = vmatpush1.msra.mxu0 0.0
    %854 = vmatprep.subr.mxu0 0.0
    %855 = vmatpush1.msra.mxu0 0.0
    %856 = vmatprep.subr.mxu0 0.0
    %857 = vmatpush1.msra.mxu0 0.0
    %858 = vmatprep.subr.mxu0 0.0
    %859 = vmatpush1.msra.mxu0 0.0
    %860 = vmatprep.subr.mxu0 0.0
    %861 = vmatpush1.msra.mxu0 0.0
    %862 = vmatprep.subr.mxu0 0.0
    %863 = vmatpush1.msra.mxu0 0.0
    %864 = vmatprep.subr.mxu0 0.0
    %865 = vmatpush1.msra.mxu0 0.0
    %866 = vmatprep.subr.mxu0 0.0
    %867 = vmatpush1.msra.mxu0 0.0
    %868 = vmatprep.subr.mxu0 0.0
    %869 = vmatpush1.msra.mxu0 0.0
    %870 = vmatprep.subr.mxu0 0.0
    %871 = vmatpush1.msra.mxu0 0.0
    %872 = vmatprep.subr.mxu0 0.0
    %873 = vmatpush1.msra.mxu0 0.0
    %874 = vmatprep.subr.mxu0 0.0
    %875 = vmatpush1.msra.mxu0 0.0
    %876 = vmatprep.subr.mxu0 0.0
    %877 = vmatpush1.msra.mxu0 0.0
    %878 = vmatprep.subr.mxu0 0.0
    %879 = vmatpush1.msra.mxu0 0.0
    %880 = vmatprep.subr.mxu0 0.0
    %881 = vmatpush1.msra.mxu0 0.0
    %882 = vmatprep.subr.mxu0 0.0
    %883 = vmatpush1.msra.mxu0 0.0
    %884 = vmatprep.subr.mxu0 0.0
    %885 = vmatpush1.msra.mxu0 0.0
    %886 = vmatprep.subr.mxu0 0.0
    %887 = vmatpush1.msra.mxu0 0.0
    %888 = vmatprep.subr.mxu0 0.0
    %889 = vmatpush1.msra.mxu0 0.0
    %890 = vmatprep.subr.mxu0 0.0
    %891 = vmatpush1.msra.mxu0 0.0
    %892 = vmatprep.subr.mxu0 0.0
    %893 = vmatpush1.msra.mxu0 0.0
    %894 = vmatprep.subr.mxu0 0.0
    %895 = vmatpush1.msra.mxu0 0.0
    %896 = vmatprep.subr.mxu0 0.0
    %897 = vmatpush1.msra.mxu0 0.0
    %898 = vmatprep.subr.mxu0 0.0
    %899 = vmatpush1.msra.mxu0 0.0
    %900 = vmatprep.subr.mxu0 0.0
    %901 = vmatpush1.msra.mxu0 0.0
    %902 = vmatprep.subr.mxu0 0.0
    %903 = vmatpush1.msra.mxu0 0.0
    %904 = vmatprep.subr.mxu0 0.0
    %905 = vmatpush1.msra.mxu0 0.0
    %906 = vmatprep.subr.mxu0 0.0
    %907 = vmatpush1.msra.mxu0 0.0
    %908 = vmatprep.subr.mxu0 0.0
    %909 = vmatpush1.msra.mxu0 0.0
    %910 = vmatprep.subr.mxu0 0.0
    %911 = vmatpush1.msra.mxu0 0.0
    %912 = vmatprep.subr.mxu0 0.0
    %913 = vmatpush1.msra.mxu0 0.0
    %914 = vmatprep.mubr.f32.mxu0 0.0
    %915 = vmatmul.mubr.f32.gmra.mrb[0].mxu0 %v845
    %v916 = vpop.f32.mrb[0].mxu0
    %v917 = vadd.f32 0.0, %v916
    %v918 = vpop.f32.mrb[0].mxu0
    %919 = vmatprep.mubr.f32.mxu0 0.0
    %920 = vmatmul.mubr.f32.gmra.mrb[0].mxu0 %v848
    %v921 = vpop.f32.mrb[0].mxu0
    %v922 = vadd.f32 0.0, %v921
    %v923 = vpop.f32.mrb[0].mxu0
    %924 = vdwg.mxu0
    %v925 = vadd.f32 %v842, %v917
    %v926 = vadd.f32 %v843, %v922
    %v928 = vsel %vm670, %v60, 0
    %930 = vmatprep.subr.mxu0 0.0
    %931 = vmatpush1.msra.mxu0 %v61
    %932 = vmatprep.subr.mxu0 0.0
    %933 = vmatpush1.msra.mxu0 %v62
    %934 = vmatprep.subr.mxu0 0.0
    %935 = vmatpush1.msra.mxu0 0.0
    %936 = vmatprep.subr.mxu0 0.0
    %937 = vmatpush1.msra.mxu0 0.0
    %938 = vmatprep.subr.mxu0 0.0
    %939 = vmatpush1.msra.mxu0 0.0
    %940 = vmatprep.subr.mxu0 0.0
    %941 = vmatpush1.msra.mxu0 0.0
    %942 = vmatprep.subr.mxu0 0.0
    %943 = vmatpush1.msra.mxu0 0.0
    %944 = vmatprep.subr.mxu0 0.0
    %945 = vmatpush1.msra.mxu0 0.0
    %946 = vmatprep.subr.mxu0 0.0
    %947 = vmatpush1.msra.mxu0 0.0
    %948 = vmatprep.subr.mxu0 0.0
    %949 = vmatpush1.msra.mxu0 0.0
    %950 = vmatprep.subr.mxu0 0.0
    %951 = vmatpush1.msra.mxu0 0.0
    %952 = vmatprep.subr.mxu0 0.0
    %953 = vmatpush1.msra.mxu0 0.0
    %954 = vmatprep.subr.mxu0 0.0
    %955 = vmatpush1.msra.mxu0 0.0
    %956 = vmatprep.subr.mxu0 0.0
    %957 = vmatpush1.msra.mxu0 0.0
    %958 = vmatprep.subr.mxu0 0.0
    %959 = vmatpush1.msra.mxu0 0.0
    %960 = vmatprep.subr.mxu0 0.0
    %961 = vmatpush1.msra.mxu0 0.0
    %962 = vmatprep.subr.mxu0 0.0
    %963 = vmatpush1.msra.mxu0 0.0
    %964 = vmatprep.subr.mxu0 0.0
    %965 = vmatpush1.msra.mxu0 0.0
    %966 = vmatprep.subr.mxu0 0.0
    %967 = vmatpush1.msra.mxu0 0.0
    %968 = vmatprep.subr.mxu0 0.0
    %969 = vmatpush1.msra.mxu0 0.0
    %970 = vmatprep.subr.mxu0 0.0
    %971 = vmatpush1.msra.mxu0 0.0
    %972 = vmatprep.subr.mxu0 0.0
    %973 = vmatpush1.msra.mxu0 0.0
    %974 = vmatprep.subr.mxu0 0.0
    %975 = vmatpush1.msra.mxu0 0.0
    %976 = vmatprep.subr.mxu0 0.0
    %977 = vmatpush1.msra.mxu0 0.0
    %978 = vmatprep.subr.mxu0 0.0
    %979 = vmatpush1.msra.mxu0 0.0
    %980 = vmatprep.subr.mxu0 0.0
    %981 = vmatpush1.msra.mxu0 0.0
    %982 = vmatprep.subr.mxu0 0.0
    %983 = vmatpush1.msra.mxu0 0.0
    %984 = vmatprep.subr.mxu0 0.0
    %985 = vmatpush1.msra.mxu0 0.0
    %986 = vmatprep.subr.mxu0 0.0
    %987 = vmatpush1.msra.mxu0 0.0
    %988 = vmatprep.subr.mxu0 0.0
    %989 = vmatpush1.msra.mxu0 0.0
    %990 = vmatprep.subr.mxu0 0.0
    %991 = vmatpush1.msra.mxu0 0.0
    %992 = vmatprep.subr.mxu0 0.0
    %993 = vmatpush1.msra.mxu0 0.0
    %994 = vmatprep.mubr.f32.mxu0 0.0
    %995 = vmatmul.mubr.f32.gmra.mrb[0].mxu0 %v928
    %v996 = vpop.f32.mrb[0].mxu0
    %v997 = vadd.f32 0.0, %v996
    %v998 = vpop.f32.mrb[0].mxu0
    %999 = vdwg.mxu0
    %1000 = vmatprep.subr.mxu0 0.0
    %1001 = vmatpush1.msra.mxu0 %v997
    %1002 = vmatprep.subr.mxu0 0.0
    %1003 = vmatpush1.msra.mxu0 0.0
    %1004 = vmatprep.subr.mxu0 0.0
    %1005 = vmatpush1.msra.mxu0 0.0
    %1006 = vmatprep.subr.mxu0 0.0
    %1007 = vmatpush1.msra.mxu0 0.0
    %1008 = vmatprep.subr.mxu0 0.0
    %1009 = vmatpush1.msra.mxu0 0.0
    %1010 = vmatprep.subr.mxu0 0.0
    %1011 = vmatpush1.msra.mxu0 0.0
    %1012 = vmatprep.subr.mxu0 0.0
    %1013 = vmatpush1.msra.mxu0 0.0
    %1014 = vmatprep.subr.mxu0 0.0
    %1015 = vmatpush1.msra.mxu0 0.0
    %1016 = vmatprep.subr.mxu0 0.0
    %1017 = vmatpush1.msra.mxu0 0.0
    %1018 = vmatprep.subr.mxu0 0.0
    %1019 = vmatpush1.msra.mxu0 0.0
    %1020 = vmatprep.subr.mxu0 0.0
    %1021 = vmatpush1.msra.mxu0 0.0
    %1022 = vmatprep.subr.mxu0 0.0
    %1023 = vmatpush1.msra.mxu0 0.0
    %1024 = vmatprep.subr.mxu0 0.0
    %1025 = vmatpush1.msra.mxu0 0.0
    %1026 = vmatprep.subr.mxu0 0.0
    %1027 = vmatpush1.msra.mxu0 0.0
    %1028 = vmatprep.subr.mxu0 0.0
    %1029 = vmatpush1.msra.mxu0 0.0
    %1030 = vmatprep.subr.mxu0 0.0
    %1031 = vmatpush1.msra.mxu0 0.0
    %1032 = vmatprep.subr.mxu0 0.0
    %1033 = vmatpush1.msra.mxu0 0.0
    %1034 = vmatprep.subr.mxu0 0.0
    %1035 = vmatpush1.msra.mxu0 0.0
    %1036 = vmatprep.subr.mxu0 0.0
    %1037 = vmatpush1.msra.mxu0 0.0
    %1038 = vmatprep.subr.mxu0 0.0
    %1039 = vmatpush1.msra.mxu0 0.0
    %1040 = vmatprep.subr.mxu0 0.0
    %1041 = vmatpush1.msra.mxu0 0.0
    %1042 = vmatprep.subr.mxu0 0.0
    %1043 = vmatpush1.msra.mxu0 0.0
    %1044 = vmatprep.subr.mxu0 0.0
    %1045 = vmatpush1.msra.mxu0 0.0
    %1046 = vmatprep.subr.mxu0 0.0
    %1047 = vmatpush1.msra.mxu0 0.0
    %1048 = vmatprep.subr.mxu0 0.0
    %1049 = vmatpush1.msra.mxu0 0.0
    %1050 = vmatprep.subr.mxu0 0.0
    %1051 = vmatpush1.msra.mxu0 0.0
    %1052 = vmatprep.subr.mxu0 0.0
    %1053 = vmatpush1.msra.mxu0 0.0
    %1054 = vmatprep.subr.mxu0 0.0
    %1055 = vmatpush1.msra.mxu0 0.0
    %1056 = vmatprep.subr.mxu0 0.0
    %1057 = vmatpush1.msra.mxu0 0.0
    %1058 = vmatprep.subr.mxu0 0.0
    %1059 = vmatpush1.msra.mxu0 0.0
    %1060 = vmatprep.subr.mxu0 0.0
    %1061 = vmatpush1.msra.mxu0 0.0
    %1062 = vmatprep.subr.mxu0 0.0
    %1063 = vmatpush1.msra.mxu0 0.0
    %1064 = vmatprep.mubr.f32.mxu0 0.0
    %1065 = vmatmul.mubr.f32.gmra.mrb[0].mxu0 %v375
    %v1066 = vpop.f32.mrb[0].mxu0
    %v1067 = vadd.f32 0.0, %v1066
    %v1068 = vpop.f32.mrb[0].mxu0
    %1069 = vdwg.mxu0
    %v1071 = vsel %vm670, %v457, 0
    %v1074 = vsel %vm670, %v458, 0
    %1076 = vmatprep.subr.mxu0 0.0
    %1077 = vmatpush1.msra.mxu0 %v925
    %1078 = vmatprep.subr.mxu0 0.0
    %1079 = vmatpush1.msra.mxu0 %v926
    %1080 = vmatprep.subr.mxu0 0.0
    %1081 = vmatpush1.msra.mxu0 0.0
    %1082 = vmatprep.subr.mxu0 0.0
    %1083 = vmatpush1.msra.mxu0 0.0
    %1084 = vmatprep.subr.mxu0 0.0
    %1085 = vmatpush1.msra.mxu0 0.0
    %1086 = vmatprep.subr.mxu0 0.0
    %1087 = vmatpush1.msra.mxu0 0.0
    %1088 = vmatprep.subr.mxu0 0.0
    %1089 = vmatpush1.msra.mxu0 0.0
    %1090 = vmatprep.subr.mxu0 0.0
    %1091 = vmatpush1.msra.mxu0 0.0
    %1092 = vmatprep.subr.mxu0 0.0
    %1093 = vmatpush1.msra.mxu0 0.0
    %1094 = vmatprep.subr.mxu0 0.0
    %1095 = vmatpush1.msra.mxu0 0.0
    %1096 = vmatprep.subr.mxu0 0.0
    %1097 = vmatpush1.msra.mxu0 0.0
    %1098 = vmatprep.subr.mxu0 0.0
    %1099 = vmatpush1.msra.mxu0 0.0
    %1100 = vmatprep.subr.mxu0 0.0
    %1101 = vmatpush1.msra.mxu0 0.0
    %1102 = vmatprep.subr.mxu0 0.0
    %1103 = vmatpush1.msra.mxu0 0.0
    %1104 = vmatprep.subr.mxu0 0.0
    %1105 = vmatpush1.msra.mxu0 0.0
    %1106 = vmatprep.subr.mxu0 0.0
    %1107 = vmatpush1.msra.mxu0 0.0
    %1108 = vmatprep.subr.mxu0 0.0
    %1109 = vmatpush1.msra.mxu0 0.0
    %1110 = vmatprep.subr.mxu0 0.0
    %1111 = vmatpush1.msra.mxu0 0.0
    %1112 = vmatprep.subr.mxu0 0.0
    %1113 = vmatpush1.msra.mxu0 0.0
    %1114 = vmatprep.subr.mxu0 0.0
    %1115 = vmatpush1.msra.mxu0 0.0
    %1116 = vmatprep.subr.mxu0 0.0
    %1117 = vmatpush1.msra.mxu0 0.0
    %1118 = vmatprep.subr.mxu0 0.0
    %1119 = vmatpush1.msra.mxu0 0.0
    %1120 = vmatprep.subr.mxu0 0.0
    %1121 = vmatpush1.msra.mxu0 0.0
    %1122 = vmatprep.subr.mxu0 0.0
    %1123 = vmatpush1.msra.mxu0 0.0
    %1124 = vmatprep.subr.mxu0 0.0
    %1125 = vmatpush1.msra.mxu0 0.0
    %1126 = vmatprep.subr.mxu0 0.0
    %1127 = vmatpush1.msra.mxu0 0.0
    %1128 = vmatprep.subr.mxu0 0.0
    %1129 = vmatpush1.msra.mxu0 0.0
    %1130 = vmatprep.subr.mxu0 0.0
    %1131 = vmatpush1.msra.mxu0 0.0
    %1132 = vmatprep.subr.mxu0 0.0
    %1133 = vmatpush1.msra.mxu0 0.0
    %1134 = vmatprep.subr.mxu0 0.0
    %1135 = vmatpush1.msra.mxu0 0.0
    %1136 = vmatprep.subr.mxu0 0.0
    %1137 = vmatpush1.msra.mxu0 0.0
    %1138 = vmatprep.subr.mxu0 0.0
    %1139 = vmatpush1.msra.mxu0 0.0
    %1140 = vmatprep.mubr.f32.mxu0 0.0
    %1141 = vmatmul.mubr.f32.gmra.mrb[0].mxu0 %v1071
    %v1142 = vpop.f32.mrb[0].mxu0
    %v1143 = vadd.f32 0.0, %v1142
    %v1144 = vpop.f32.mrb[0].mxu0
    %1145 = vmatprep.mubr.f32.mxu0 0.0
    %1146 = vmatmul.mubr.f32.gmra.mrb[0].mxu0 %v1074
    %v1147 = vpop.f32.mrb[0].mxu0
    %v1148 = vadd.f32 0.0, %v1147
    %v1149 = vpop.f32.mrb[0].mxu0
    %1150 = vdwg.mxu0
    %v1152 = vsel %vm35, %v1148, 0
    %1154 = vmatprep.subr.mxu0 0.0
    %1155 = vmatpush1.msra.mxu0 %v87
    %1156 = vmatprep.subr.mxu0 0.0
    %1157 = vmatpush1.msra.mxu0 %v88
    %1158 = vmatprep.subr.mxu0 0.0
    %1159 = vmatpush1.msra.mxu0 %v89
    %1160 = vmatprep.subr.mxu0 0.0
    %1161 = vmatpush1.msra.mxu0 %v90
    %1162 = vmatprep.subr.mxu0 0.0
    %1163 = vmatpush1.msra.mxu0 0.0
    %1164 = vmatprep.subr.mxu0 0.0
    %1165 = vmatpush1.msra.mxu0 0.0
    %1166 = vmatprep.subr.mxu0 0.0
    %1167 = vmatpush1.msra.mxu0 0.0
    %1168 = vmatprep.subr.mxu0 0.0
    %1169 = vmatpush1.msra.mxu0 0.0
    %1170 = vmatprep.subr.mxu0 0.0
    %1171 = vmatpush1.msra.mxu0 0.0
    %1172 = vmatprep.subr.mxu0 0.0
    %1173 = vmatpush1.msra.mxu0 0.0
    %1174 = vmatprep.subr.mxu0 0.0
    %1175 = vmatpush1.msra.mxu0 0.0
    %1176 = vmatprep.subr.mxu0 0.0
    %1177 = vmatpush1.msra.mxu0 0.0
    %1178 = vmatprep.subr.mxu0 0.0
    %1179 = vmatpush1.msra.mxu0 0.0
    %1180 = vmatprep.subr.mxu0 0.0
    %1181 = vmatpush1.msra.mxu0 0.0
    %1182 = vmatprep.subr.mxu0 0.0
    %1183 = vmatpush1.msra.mxu0 0.0
    %1184 = vmatprep.subr.mxu0 0.0
    %1185 = vmatpush1.msra.mxu0 0.0
    %1186 = vmatprep.subr.mxu0 0.0
    %1187 = vmatpush1.msra.mxu0 0.0
    %1188 = vmatprep.subr.mxu0 0.0
    %1189 = vmatpush1.msra.mxu0 0.0
    %1190 = vmatprep.subr.mxu0 0.0
    %1191 = vmatpush1.msra.mxu0 0.0
    %1192 = vmatprep.subr.mxu0 0.0
    %1193 = vmatpush1.msra.mxu0 0.0
    %1194 = vmatprep.subr.mxu0 0.0
    %1195 = vmatpush1.msra.mxu0 0.0
    %1196 = vmatprep.subr.mxu0 0.0
    %1197 = vmatpush1.msra.mxu0 0.0
    %1198 = vmatprep.subr.mxu0 0.0
    %1199 = vmatpush1.msra.mxu0 0.0
    %1200 = vmatprep.subr.mxu0 0.0
    %1201 = vmatpush1.msra.mxu0 0.0
    %1202 = vmatprep.subr.mxu0 0.0
    %1203 = vmatpush1.msra.mxu0 0.0
    %1204 = vmatprep.subr.mxu0 0.0
    %1205 = vmatpush1.msra.mxu0 0.0
    %1206 = vmatprep.subr.mxu0 0.0
    %1207 = vmatpush1.msra.mxu0 0.0
    %1208 = vmatprep.subr.mxu0 0.0
    %1209 = vmatpush1.msra.mxu0 0.0
    %1210 = vmatprep.subr.mxu0 0.0
    %1211 = vmatpush1.msra.mxu0 0.0
    %1212 = vmatprep.subr.mxu0 0.0
    %1213 = vmatpush1.msra.mxu0 0.0
    %1214 = vmatprep.subr.mxu0 0.0
    %1215 = vmatpush1.msra.mxu0 0.0
    %1216 = vmatprep.subr.mxu0 0.0
    %1217 = vmatpush1.msra.mxu0 0.0
    %1218 = vmatprep.mubr.f32.mxu0 0.0
    %1219 = vmatmul.mubr.f32.gmra.mrb[0].mxu0 %v1152
    %v1220 = vpop.f32.mrb[0].mxu0
    %v1221 = vadd.f32 0.0, %v1220
    %v1222 = vpop.f32.mrb[0].mxu0
    %1223 = vdwg.mxu0
    %v1225 = vsel %vm35, %v1143, 0
    %1227 = vmatprep.subr.mxu0 0.0
    %1228 = vmatpush1.msra.mxu0 %v83
    %1229 = vmatprep.subr.mxu0 0.0
    %1230 = vmatpush1.msra.mxu0 %v84
    %1231 = vmatprep.subr.mxu0 0.0
    %1232 = vmatpush1.msra.mxu0 %v85
    %1233 = vmatprep.subr.mxu0 0.0
    %1234 = vmatpush1.msra.mxu0 %v86
    %1235 = vmatprep.subr.mxu0 0.0
    %1236 = vmatpush1.msra.mxu0 0.0
    %1237 = vmatprep.subr.mxu0 0.0
    %1238 = vmatpush1.msra.mxu0 0.0
    %1239 = vmatprep.subr.mxu0 0.0
    %1240 = vmatpush1.msra.mxu0 0.0
    %1241 = vmatprep.subr.mxu0 0.0
    %1242 = vmatpush1.msra.mxu0 0.0
    %1243 = vmatprep.subr.mxu0 0.0
    %1244 = vmatpush1.msra.mxu0 0.0
    %1245 = vmatprep.subr.mxu0 0.0
    %1246 = vmatpush1.msra.mxu0 0.0
    %1247 = vmatprep.subr.mxu0 0.0
    %1248 = vmatpush1.msra.mxu0 0.0
    %1249 = vmatprep.subr.mxu0 0.0
    %1250 = vmatpush1.msra.mxu0 0.0
    %1251 = vmatprep.subr.mxu0 0.0
    %1252 = vmatpush1.msra.mxu0 0.0
    %1253 = vmatprep.subr.mxu0 0.0
    %1254 = vmatpush1.msra.mxu0 0.0
    %1255 = vmatprep.subr.mxu0 0.0
    %1256 = vmatpush1.msra.mxu0 0.0
    %1257 = vmatprep.subr.mxu0 0.0
    %1258 = vmatpush1.msra.mxu0 0.0
    %1259 = vmatprep.subr.mxu0 0.0
    %1260 = vmatpush1.msra.mxu0 0.0
    %1261 = vmatprep.subr.mxu0 0.0
    %1262 = vmatpush1.msra.mxu0 0.0
    %1263 = vmatprep.subr.mxu0 0.0
    %1264 = vmatpush1.msra.mxu0 0.0
    %1265 = vmatprep.subr.mxu0 0.0
    %1266 = vmatpush1.msra.mxu0 0.0
    %1267 = vmatprep.subr.mxu0 0.0
    %1268 = vmatpush1.msra.mxu0 0.0
    %1269 = vmatprep.subr.mxu0 0.0
    %1270 = vmatpush1.msra.mxu0 0.0
    %1271 = vmatprep.subr.mxu0 0.0
    %1272 = vmatpush1.msra.mxu0 0.0
    %1273 = vmatprep.subr.mxu0 0.0
    %1274 = vmatpush1.msra.mxu0 0.0
    %1275 = vmatprep.subr.mxu0 0.0
    %1276 = vmatpush1.msra.mxu0 0.0
    %1277 = vmatprep.subr.mxu0 0.0
    %1278 = vmatpush1.msra.mxu0 0.0
    %1279 = vmatprep.subr.mxu0 0.0
    %1280 = vmatpush1.msra.mxu0 0.0
    %1281 = vmatprep.subr.mxu0 0.0
    %1282 = vmatpush1.msra.mxu0 0.0
    %1283 = vmatprep.subr.mxu0 0.0
    %1284 = vmatpush1.msra.mxu0 0.0
    %1285 = vmatprep.subr.mxu0 0.0
    %1286 = vmatpush1.msra.mxu0 0.0
    %1287 = vmatprep.subr.mxu0 0.0
    %1288 = vmatpush1.msra.mxu0 0.0
    %1289 = vmatprep.subr.mxu0 0.0
    %1290 = vmatpush1.msra.mxu0 0.0
    %1291 = vmatprep.mubr.f32.mxu0 0.0
    %1292 = vmatmul.mubr.f32.gmra.mrb[0].mxu0 %v1225
    %v1293 = vpop.f32.mrb[0].mxu0
    %v1294 = vadd.f32 %v1221, %v1293
    %v1295 = vpop.f32.mrb[0].mxu0
    %1296 = vdwg.mxu0
    %v1298 = vsel %vm670, %v1067, 0
    %1300 = vmatprep.subr.mxu0 0.0
    %1301 = vmatpush1.msra.mxu0 %v91
    %1302 = vmatprep.subr.mxu0 0.0
    %1303 = vmatpush1.msra.mxu0 %v92
    %1304 = vmatprep.subr.mxu0 0.0
    %1305 = vmatpush1.msra.mxu0 0.0
    %1306 = vmatprep.subr.mxu0 0.0
    %1307 = vmatpush1.msra.mxu0 0.0
    %1308 = vmatprep.subr.mxu0 0.0
    %1309 = vmatpush1.msra.mxu0 0.0
    %1310 = vmatprep.subr.mxu0 0.0
    %1311 = vmatpush1.msra.mxu0 0.0
    %1312 = vmatprep.subr.mxu0 0.0
    %1313 = vmatpush1.msra.mxu0 0.0
    %1314 = vmatprep.subr.mxu0 0.0
    %1315 = vmatpush1.msra.mxu0 0.0
    %1316 = vmatprep.subr.mxu0 0.0
    %1317 = vmatpush1.msra.mxu0 0.0
    %1318 = vmatprep.subr.mxu0 0.0
    %1319 = vmatpush1.msra.mxu0 0.0
    %1320 = vmatprep.subr.mxu0 0.0
    %1321 = vmatpush1.msra.mxu0 0.0
    %1322 = vmatprep.subr.mxu0 0.0
    %1323 = vmatpush1.msra.mxu0 0.0
    %1324 = vmatprep.subr.mxu0 0.0
    %1325 = vmatpush1.msra.mxu0 0.0
    %1326 = vmatprep.subr.mxu0 0.0
    %1327 = vmatpush1.msra.mxu0 0.0
    %1328 = vmatprep.subr.mxu0 0.0
    %1329 = vmatpush1.msra.mxu0 0.0
    %1330 = vmatprep.subr.mxu0 0.0
    %1331 = vmatpush1.msra.mxu0 0.0
    %1332 = vmatprep.subr.mxu0 0.0
    %1333 = vmatpush1.msra.mxu0 0.0
    %1334 = vmatprep.subr.mxu0 0.0
    %1335 = vmatpush1.msra.mxu0 0.0
    %1336 = vmatprep.subr.mxu0 0.0
    %1337 = vmatpush1.msra.mxu0 0.0
    %1338 = vmatprep.subr.mxu0 0.0
    %1339 = vmatpush1.msra.mxu0 0.0
    %1340 = vmatprep.subr.mxu0 0.0
    %1341 = vmatpush1.msra.mxu0 0.0
    %1342 = vmatprep.subr.mxu0 0.0
    %1343 = vmatpush1.msra.mxu0 0.0
    %1344 = vmatprep.subr.mxu0 0.0
    %1345 = vmatpush1.msra.mxu0 0.0
    %1346 = vmatprep.subr.mxu0 0.0
    %1347 = vmatpush1.msra.mxu0 0.0
    %1348 = vmatprep.subr.mxu0 0.0
    %1349 = vmatpush1.msra.mxu0 0.0
    %1350 = vmatprep.subr.mxu0 0.0
    %1351 = vmatpush1.msra.mxu0 0.0
    %1352 = vmatprep.subr.mxu0 0.0
    %1353 = vmatpush1.msra.mxu0 0.0
    %1354 = vmatprep.subr.mxu0 0.0
    %1355 = vmatpush1.msra.mxu0 0.0
    %1356 = vmatprep.subr.mxu0 0.0
    %1357 = vmatpush1.msra.mxu0 0.0
    %1358 = vmatprep.subr.mxu0 0.0
    %1359 = vmatpush1.msra.mxu0 0.0
    %1360 = vmatprep.subr.mxu0 0.0
    %1361 = vmatpush1.msra.mxu0 0.0
    %1362 = vmatprep.subr.mxu0 0.0
    %1363 = vmatpush1.msra.mxu0 0.0
    %1364 = vmatprep.mubr.f32.mxu0 0.0
    %1365 = vmatmul.mubr.f32.gmra.mrb[0].mxu0 %v1298
    %v1366 = vpop.f32.mrb[0].mxu0
    %v1367 = vadd.f32 0.0, %v1366
    %v1368 = vpop.f32.mrb[0].mxu0
    %1369 = vdwg.mxu0
    %v1370 = vadd.f32 %v1294, %v1367
    %v1371 = vmul.f32 %v1370, 0.2
    %v1372 = vmax.f32 %v1370, %v1371
    %1373 = vmatprep.subr.mxu0 0.0
    %1374 = vmatpush1.msra.mxu0 %v1372
    %1375 = vmatprep.subr.mxu0 0.0
    %1376 = vmatpush1.msra.mxu0 0.0
    %1377 = vmatprep.subr.mxu0 0.0
    %1378 = vmatpush1.msra.mxu0 0.0
    %1379 = vmatprep.subr.mxu0 0.0
    %1380 = vmatpush1.msra.mxu0 0.0
    %1381 = vmatprep.subr.mxu0 0.0
    %1382 = vmatpush1.msra.mxu0 0.0
    %1383 = vmatprep.subr.mxu0 0.0
    %1384 = vmatpush1.msra.mxu0 0.0
    %1385 = vmatprep.subr.mxu0 0.0
    %1386 = vmatpush1.msra.mxu0 0.0
    %1387 = vmatprep.subr.mxu0 0.0
    %1388 = vmatpush1.msra.mxu0 0.0
    %1389 = vmatprep.subr.mxu0 0.0
    %1390 = vmatpush1.msra.mxu0 0.0
    %1391 = vmatprep.subr.mxu0 0.0
    %1392 = vmatpush1.msra.mxu0 0.0
    %1393 = vmatprep.subr.mxu0 0.0
    %1394 = vmatpush1.msra.mxu0 0.0
    %1395 = vmatprep.subr.mxu0 0.0
    %1396 = vmatpush1.msra.mxu0 0.0
    %1397 = vmatprep.subr.mxu0 0.0
    %1398 = vmatpush1.msra.mxu0 0.0
    %1399 = vmatprep.subr.mxu0 0.0
    %1400 = vmatpush1.msra.mxu0 0.0
    %1401 = vmatprep.subr.mxu0 0.0
    %1402 = vmatpush1.msra.mxu0 0.0
    %1403 = vmatprep.subr.mxu0 0.0
    %1404 = vmatpush1.msra.mxu0 0.0
    %1405 = vmatprep.subr.mxu0 0.0
    %1406 = vmatpush1.msra.mxu0 0.0
    %1407 = vmatprep.subr.mxu0 0.0
    %1408 = vmatpush1.msra.mxu0 0.0
    %1409 = vmatprep.subr.mxu0 0.0
    %1410 = vmatpush1.msra.mxu0 0.0
    %1411 = vmatprep.subr.mxu0 0.0
    %1412 = vmatpush1.msra.mxu0 0.0
    %1413 = vmatprep.subr.mxu0 0.0
    %1414 = vmatpush1.msra.mxu0 0.0
    %1415 = vmatprep.subr.mxu0 0.0
    %1416 = vmatpush1.msra.mxu0 0.0
    %1417 = vmatprep.subr.mxu0 0.0
    %1418 = vmatpush1.msra.mxu0 0.0
    %1419 = vmatprep.subr.mxu0 0.0
    %1420 = vmatpush1.msra.mxu0 0.0
    %1421 = vmatprep.subr.mxu0 0.0
    %1422 = vmatpush1.msra.mxu0 0.0
    %1423 = vmatprep.subr.mxu0 0.0
    %1424 = vmatpush1.msra.mxu0 0.0
    %1425 = vmatprep.subr.mxu0 0.0
    %1426 = vmatpush1.msra.mxu0 0.0
    %1427 = vmatprep.subr.mxu0 0.0
    %1428 = vmatpush1.msra.mxu0 0.0
    %1429 = vmatprep.subr.mxu0 0.0
    %1430 = vmatpush1.msra.mxu0 0.0
    %1431 = vmatprep.subr.mxu0 0.0
    %1432 = vmatpush1.msra.mxu0 0.0
    %1433 = vmatprep.subr.mxu0 0.0
    %1434 = vmatpush1.msra.mxu0 0.0
    %1435 = vmatprep.subr.mxu0 0.0
    %1436 = vmatpush1.msra.mxu0 0.0
    %1437 = vmatprep.mubr.f32.mxu0 0.0
    %1438 = vmatmul.mubr.f32.gmra.mrb[0].mxu0 %v748
    %v1439 = vpop.f32.mrb[0].mxu0
    %v1440 = vadd.f32 0.0, %v1439
    %v1441 = vpop.f32.mrb[0].mxu0
    %1442 = vmatprep.mubr.f32.mxu0 0.0
    %1443 = vmatmul.mubr.f32.gmra.mrb[0].mxu0 %v751
    %v1444 = vpop.f32.mrb[0].mxu0
    %v1445 = vadd.f32 0.0, %v1444
    %v1446 = vpop.f32.mrb[0].mxu0
    %1447 = vdwg.mxu0
    %vm1448 = vcmp.gt.f32.partialorder %v1440, 0.0
    %vm1449 = vcmp.gt.f32.partialorder %v1445, 0.0
    %v1450 = vmin.f32 %v1440, 0.0
    %v1451 = vmin.f32 %v1445, 0.0
    %v1452 = vmul.f32 %v1450, 1.442695
    %v1453 = vpow.pop %v1452
    %v1454 = vmul.f32 %v1451, 1.442695
    %v1455 = vpow.pop %v1454
    %v1456 = vsub.f32 %v1453, 1.0
    %v1457 = vsub.f32 %v1455, 1.0
    %v1458 = vsel %vm1448, %v1440, %v1456
    %v1459 = vsel %vm1449, %v1445, %v1457
    %v1461 = vsel %vm670, %v997, 0
    %1463 = vmatprep.subr.mxu0 0.0
    %1464 = vmatpush1.msra.mxu0 %v63
    %1465 = vmatprep.subr.mxu0 0.0
    %1466 = vmatpush1.msra.mxu0 %v64
    %1467 = vmatprep.subr.mxu0 0.0
    %1468 = vmatpush1.msra.mxu0 0.0
    %1469 = vmatprep.subr.mxu0 0.0
    %1470 = vmatpush1.msra.mxu0 0.0
    %1471 = vmatprep.subr.mxu0 0.0
    %1472 = vmatpush1.msra.mxu0 0.0
    %1473 = vmatprep.subr.mxu0 0.0
    %1474 = vmatpush1.msra.mxu0 0.0
    %1475 = vmatprep.subr.mxu0 0.0
    %1476 = vmatpush1.msra.mxu0 0.0
    %1477 = vmatprep.subr.mxu0 0.0
    %1478 = vmatpush1.msra.mxu0 0.0
    %1479 = vmatprep.subr.mxu0 0.0
    %1480 = vmatpush1.msra.mxu0 0.0
    %1481 = vmatprep.subr.mxu0 0.0
    %1482 = vmatpush1.msra.mxu0 0.0
    %1483 = vmatprep.subr.mxu0 0.0
    %1484 = vmatpush1.msra.mxu0 0.0
    %1485 = vmatprep.subr.mxu0 0.0
    %1486 = vmatpush1.msra.mxu0 0.0
    %1487 = vmatprep.subr.mxu0 0.0
    %1488 = vmatpush1.msra.mxu0 0.0
    %1489 = vmatprep.subr.mxu0 0.0
    %1490 = vmatpush1.msra.mxu0 0.0
    %1491 = vmatprep.subr.mxu0 0.0
    %1492 = vmatpush1.msra.mxu0 0.0
    %1493 = vmatprep.subr.mxu0 0.0
    %1494 = vmatpush1.msra.mxu0 0.0
    %1495 = vmatprep.subr.mxu0 0.0
    %1496 = vmatpush1.msra.mxu0 0.0
    %1497 = vmatprep.subr.mxu0 0.0
    %1498 = vmatpush1.msra.mxu0 0.0
    %1499 = vmatprep.subr.mxu0 0.0
    %1500 = vmatpush1.msra.mxu0 0.0
    %1501 = vmatprep.subr.mxu0 0.0
    %1502 = vmatpush1.msra.mxu0 0.0
    %1503 = vmatprep.subr.mxu0 0.0
    %1504 = vmatpush1.msra.mxu0 0.0
    %1505 = vmatprep.subr.mxu0 0.0
    %1506 = vmatpush1.msra.mxu0 0.0
    %1507 = vmatprep.subr.mxu0 0.0
    %1508 = vmatpush1.msra.mxu0 0.0
    %1509 = vmatprep.subr.mxu0 0.0
    %1510 = vmatpush1.msra.mxu0 0.0
    %1511 = vmatprep.subr.mxu0 0.0
    %1512 = vmatpush1.msra.mxu0 0.0
    %1513 = vmatprep.subr.mxu0 0.0
    %1514 = vmatpush1.msra.mxu0 0.0
    %1515 = vmatprep.subr.mxu0 0.0
    %1516 = vmatpush1.msra.mxu0 0.0
    %1517 = vmatprep.subr.mxu0 0.0
    %1518 = vmatpush1.msra.mxu0 0.0
    %1519 = vmatprep.subr.mxu0 0.0
    %1520 = vmatpush1.msra.mxu0 0.0
    %1521 = vmatprep.subr.mxu0 0.0
    %1522 = vmatpush1.msra.mxu0 0.0
    %1523 = vmatprep.subr.mxu0 0.0
    %1524 = vmatpush1.msra.mxu0 0.0
    %1525 = vmatprep.subr.mxu0 0.0
    %1526 = vmatpush1.msra.mxu0 0.0
    %1527 = vmatprep.mubr.f32.mxu0 0.0
    %1528 = vmatmul.mubr.f32.gmra.mrb[0].mxu0 %v1461
    %v1529 = vpop.f32.mrb[0].mxu0
    %v1530 = vadd.f32 0.0, %v1529
    %v1531 = vpop.f32.mrb[0].mxu0
    %1532 = vdwg.mxu0
    %v1534 = vsel %vm670, %v464, 0
    %1536 = vmatprep.subr.mxu0 0.0
    %1537 = vmatpush1.msra.mxu0 %v1458
    %1538 = vmatprep.subr.mxu0 0.0
    %1539 = vmatpush1.msra.mxu0 %v1459
    %1540 = vmatprep.subr.mxu0 0.0
    %1541 = vmatpush1.msra.mxu0 0.0
    %1542 = vmatprep.subr.mxu0 0.0
    %1543 = vmatpush1.msra.mxu0 0.0
    %1544 = vmatprep.subr.mxu0 0.0
    %1545 = vmatpush1.msra.mxu0 0.0
    %1546 = vmatprep.subr.mxu0 0.0
    %1547 = vmatpush1.msra.mxu0 0.0
    %1548 = vmatprep.subr.mxu0 0.0
    %1549 = vmatpush1.msra.mxu0 0.0
    %1550 = vmatprep.subr.mxu0 0.0
    %1551 = vmatpush1.msra.mxu0 0.0
    %1552 = vmatprep.subr.mxu0 0.0
    %1553 = vmatpush1.msra.mxu0 0.0
    %1554 = vmatprep.subr.mxu0 0.0
    %1555 = vmatpush1.msra.mxu0 0.0
    %1556 = vmatprep.subr.mxu0 0.0
    %1557 = vmatpush1.msra.mxu0 0.0
    %1558 = vmatprep.subr.mxu0 0.0
    %1559 = vmatpush1.msra.mxu0 0.0
    %1560 = vmatprep.subr.mxu0 0.0
    %1561 = vmatpush1.msra.mxu0 0.0
    %1562 = vmatprep.subr.mxu0 0.0
    %1563 = vmatpush1.msra.mxu0 0.0
    %1564 = vmatprep.subr.mxu0 0.0
    %1565 = vmatpush1.msra.mxu0 0.0
    %1566 = vmatprep.subr.mxu0 0.0
    %1567 = vmatpush1.msra.mxu0 0.0
    %1568 = vmatprep.subr.mxu0 0.0
    %1569 = vmatpush1.msra.mxu0 0.0
    %1570 = vmatprep.subr.mxu0 0.0
    %1571 = vmatpush1.msra.mxu0 0.0
    %1572 = vmatprep.subr.mxu0 0.0
    %1573 = vmatpush1.msra.mxu0 0.0
    %1574 = vmatprep.subr.mxu0 0.0
    %1575 = vmatpush1.msra.mxu0 0.0
    %1576 = vmatprep.subr.mxu0 0.0
    %1577 = vmatpush1.msra.mxu0 0.0
    %1578 = vmatprep.subr.mxu0 0.0
    %1579 = vmatpush1.msra.mxu0 0.0
    %1580 = vmatprep.subr.mxu0 0.0
    %1581 = vmatpush1.msra.mxu0 0.0
    %1582 = vmatprep.subr.mxu0 0.0
    %1583 = vmatpush1.msra.mxu0 0.0
    %1584 = vmatprep.subr.mxu0 0.0
    %1585 = vmatpush1.msra.mxu0 0.0
    %1586 = vmatprep.subr.mxu0 0.0
    %1587 = vmatpush1.msra.mxu0 0.0
    %1588 = vmatprep.subr.mxu0 0.0
    %1589 = vmatpush1.msra.mxu0 0.0
    %1590 = vmatprep.subr.mxu0 0.0
    %1591 = vmatpush1.msra.mxu0 0.0
    %1592 = vmatprep.subr.mxu0 0.0
    %1593 = vmatpush1.msra.mxu0 0.0
    %1594 = vmatprep.subr.mxu0 0.0
    %1595 = vmatpush1.msra.mxu0 0.0
    %1596 = vmatprep.subr.mxu0 0.0
    %1597 = vmatpush1.msra.mxu0 0.0
    %1598 = vmatprep.subr.mxu0 0.0
    %1599 = vmatpush1.msra.mxu0 0.0
    %1600 = vmatprep.mubr.f32.mxu0 0.0
    %1601 = vmatmul.mubr.f32.gmra.mrb[0].mxu0 %v1534
    %v1602 = vpop.f32.mrb[0].mxu0
    %v1603 = vadd.f32 %v291, %v1602
    %v1604 = vpop.f32.mrb[0].mxu0
    %1605 = vdwg.mxu0
    %v1606 = vmul.f32 %v1603, %v1603
    %v1607 = vsel %vm35, %v1606, 0.0
    %1608 = vadd.xlane.f32.xlu0 %v1607
    %v1609 = vpop.xlane.xlu0 %1608
    %v1610 = vmax.f32 %v1609, 1e-24
    %v1611 = vrsqrt.pop %v1610
    %v1612 = vmul.f32 %v1603, %v1611
    %v1613 = vsub.f32 1.0, %v498
    %v1614 = vsub.f32 1.0, %v501
    %v1615 = vsub.f32 1.0, %v504
    %v1616 = vsub.f32 1.0, %v507
    %v1617 = vmul.f32 %v56, %v1613
    %v1618 = vmul.f32 %v57, %v1614
    %v1619 = vmul.f32 %v58, %v1615
    %v1620 = vmul.f32 %v59, %v1616
    %v1622 = vsel %vm373, %v492, 0
    %v1625 = vsel %vm373, %v493, 0
    %v1628 = vsel %vm373, %v494, 0
    %v1631 = vsel %vm373, %v495, 0
    %1633 = vmatprep.subr.mxu0 0.0
    %1634 = vmatpush1.msra.mxu0 %v1612
    %1635 = vmatprep.subr.mxu0 0.0
    %1636 = vmatpush1.msra.mxu0 0.0
    %1637 = vmatprep.subr.mxu0 0.0
    %1638 = vmatpush1.msra.mxu0 0.0
    %1639 = vmatprep.subr.mxu0 0.0
    %1640 = vmatpush1.msra.mxu0 0.0
    %1641 = vmatprep.subr.mxu0 0.0
    %1642 = vmatpush1.msra.mxu0 0.0
    %1643 = vmatprep.subr.mxu0 0.0
    %1644 = vmatpush1.msra.mxu0 0.0
    %1645 = vmatprep.subr.mxu0 0.0
    %1646 = vmatpush1.msra.mxu0 0.0
    %1647 = vmatprep.subr.mxu0 0.0
    %1648 = vmatpush1.msra.mxu0 0.0
    %1649 = vmatprep.subr.mxu0 0.0
    %1650 = vmatpush1.msra.mxu0 0.0
    %1651 = vmatprep.subr.mxu0 0.0
    %1652 = vmatpush1.msra.mxu0 0.0
    %1653 = vmatprep.subr.mxu0 0.0
    %1654 = vmatpush1.msra.mxu0 0.0
    %1655 = vmatprep.subr.mxu0 0.0
    %1656 = vmatpush1.msra.mxu0 0.0
    %1657 = vmatprep.subr.mxu0 0.0
    %1658 = vmatpush1.msra.mxu0 0.0
    %1659 = vmatprep.subr.mxu0 0.0
    %1660 = vmatpush1.msra.mxu0 0.0
    %1661 = vmatprep.subr.mxu0 0.0
    %1662 = vmatpush1.msra.mxu0 0.0
    %1663 = vmatprep.subr.mxu0 0.0
    %1664 = vmatpush1.msra.mxu0 0.0
    %1665 = vmatprep.subr.mxu0 0.0
    %1666 = vmatpush1.msra.mxu0 0.0
    %1667 = vmatprep.subr.mxu0 0.0
    %1668 = vmatpush1.msra.mxu0 0.0
    %1669 = vmatprep.subr.mxu0 0.0
    %1670 = vmatpush1.msra.mxu0 0.0
    %1671 = vmatprep.subr.mxu0 0.0
    %1672 = vmatpush1.msra.mxu0 0.0
    %1673 = vmatprep.subr.mxu0 0.0
    %1674 = vmatpush1.msra.mxu0 0.0
    %1675 = vmatprep.subr.mxu0 0.0
    %1676 = vmatpush1.msra.mxu0 0.0
    %1677 = vmatprep.subr.mxu0 0.0
    %1678 = vmatpush1.msra.mxu0 0.0
    %1679 = vmatprep.subr.mxu0 0.0
    %1680 = vmatpush1.msra.mxu0 0.0
    %1681 = vmatprep.subr.mxu0 0.0
    %1682 = vmatpush1.msra.mxu0 0.0
    %1683 = vmatprep.subr.mxu0 0.0
    %1684 = vmatpush1.msra.mxu0 0.0
    %1685 = vmatprep.subr.mxu0 0.0
    %1686 = vmatpush1.msra.mxu0 0.0
    %1687 = vmatprep.subr.mxu0 0.0
    %1688 = vmatpush1.msra.mxu0 0.0
    %1689 = vmatprep.subr.mxu0 0.0
    %1690 = vmatpush1.msra.mxu0 0.0
    %1691 = vmatprep.subr.mxu0 0.0
    %1692 = vmatpush1.msra.mxu0 0.0
    %1693 = vmatprep.subr.mxu0 0.0
    %1694 = vmatpush1.msra.mxu0 0.0
    %1695 = vmatprep.subr.mxu0 0.0
    %1696 = vmatpush1.msra.mxu0 0.0
    %1697 = vmatprep.mubr.f32.mxu0 0.0
    %1698 = vmatmul.mubr.f32.gmra.mrb[0].mxu0 %v1622
    %v1699 = vpop.f32.mrb[0].mxu0
    %v1700 = vadd.f32 0.0, %v1699
    %v1701 = vpop.f32.mrb[0].mxu0
    %1702 = vmatprep.mubr.f32.mxu0 0.0
    %1703 = vmatmul.mubr.f32.gmra.mrb[0].mxu0 %v1625
    %v1704 = vpop.f32.mrb[0].mxu0
    %v1705 = vadd.f32 0.0, %v1704
    %v1706 = vpop.f32.mrb[0].mxu0
    %1707 = vmatprep.mubr.f32.mxu0 0.0
    %1708 = vmatmul.mubr.f32.gmra.mrb[0].mxu0 %v1628
    %v1709 = vpop.f32.mrb[0].mxu0
    %v1710 = vadd.f32 0.0, %v1709
    %v1711 = vpop.f32.mrb[0].mxu0
    %1712 = vmatprep.mubr.f32.mxu0 0.0
    %1713 = vmatmul.mubr.f32.gmra.mrb[0].mxu0 %v1631
    %v1714 = vpop.f32.mrb[0].mxu0
    %v1715 = vadd.f32 0.0, %v1714
    %v1716 = vpop.f32.mrb[0].mxu0
    %1717 = vdwg.mxu0
    %v1718 = vadd.f32 %v1617, %v1700
    %v1719 = vadd.f32 %v1618, %v1705
    %v1720 = vadd.f32 %v1619, %v1710
    %v1721 = vadd.f32 %v1620, %v1715
    %1722 = vst.msk [vmem:[#allocation2] sm:$0xff] %vm35, %v1718
    %1723 = vst.msk [vmem:[#allocation2 + $0x8] sm:$0xff] %vm35, %v1719
    %1724 = vst.msk [vmem:[#allocation2 + $0x10] sm:$0xff] %vm35, %v1720
    %1725 = vst.msk [vmem:[#allocation2 + $0x18] sm:$0xff] %vm35, %v1721
    %1726 = vst.msk [vmem:[#allocation4] sm:$0xff] %vm35, %v1530
    // Predicated region
    $region26: #{tpu_custom_call.1} parent=1 // pred_check
      _
    $region27: #{tpu_custom_call.1} parent=1 // pred_check_branch
      %1728 = sbr.rel (0) target = $region29
    $region28: #{tpu_custom_call.1} parent=1 // pred_region
      %s1730 = ssub.s32 512, 512
      %1731 = vsyncadd [#allocation3], %s1730
      %s1732 = sshll.u32 [#allocation2], 4
      %s1733 = int_to_ptr.vmem [resolvable:$true] %s1732
      %1738 = dma.vmem_to_hbm [thread:$0]  %s1733, 512, %s6, [#allocation3], 128, 128, 8
    $region29: #{tpu_custom_call.1} parent=1 // pred_fallthru
      _
    // Predicated region
    $region30: #{tpu_custom_call.1} parent=1 // pred_check
      _
    $region31: #{tpu_custom_call.1} parent=1 // pred_check_branch
      %1740 = sbr.rel (0) target = $region33
    $region32: #{tpu_custom_call.1} parent=1 // pred_region
      %s1742 = ssub.s32 128, 128
      %1743 = vsyncadd [#allocation5], %s1742
      %s1745 = sshll.u32 [#allocation4], 4
      %s1746 = int_to_ptr.vmem [resolvable:$true] %s1745
      %1748 = dma.vmem_to_hbm [thread:$0]  %s1746, 128, %s7, [#allocation5]
    $region33: #{tpu_custom_call.1} parent=1 // pred_fallthru
      _
    // Predicated region
    $region34: #{tpu_custom_call.1} parent=1 // pred_check
      _
    $region35: #{tpu_custom_call.1} parent=1 // pred_check_branch
      %1750 = sbr.rel (0) target = $region37
    $region36: #{tpu_custom_call.1} parent=1 // pred_region
      %1751 = dma.done [#allocation3], 512
    $region37: #{tpu_custom_call.1} parent=1 // pred_fallthru
      _
    // Predicated region
    $region38: #{tpu_custom_call.1} parent=1 // pred_check
      _
    $region39: #{tpu_custom_call.1} parent=1 // pred_check_branch
      %1753 = sbr.rel (0) target = $region41
    $region40: #{tpu_custom_call.1} parent=1 // pred_region
      %1754 = dma.done [#allocation5], 128
    $region41: #{tpu_custom_call.1} parent=1 // pred_fallthru
      _
    %1755 = vsyncpa [#allocation3], 1
    %1756 = vsyncpa [#allocation5], 1

</llo_original>
